<compile_context>
chip_gen: v7x
topology: tpu7x:2x2x1
jax: 0.10.0
libtpu: 0.0.40
codegen_flags: <defaults>
</compile_context>

<pallas_src>
import functools

import jax
import jax.numpy as jnp
from jax.experimental import pallas as pl
from jax.experimental.pallas import tpu as pltpu

HIDDEN_LAYERS = [400, 400, 256]
_LANE = 128
_SUBLANE_BF16 = 16   # bf16 packs 16 rows per (sublane, lane) vreg tile


def _round_up(n, m):
    return ((n + m - 1) // m) * m


def _choose_batch_tile(b_pad, *, max_tile=512, min_grid=1):
    """Pick the batch tile size.

    * Big tiles amortize the ~0.35 us per-grid-step pipeline overhead.
    * 256-row multiples fill the v6e/v7x 256x256 MXU passes (v5e's 128x128
      MXU is native at any 128-multiple).
    * min_grid lets a v7x caller force >=2 grid steps so the "parallel" batch
      axis can shard across both TensorCores.
    * Candidates are scored by (padding waste, not-256-multiple, -size) so
      awkward batch sizes (e.g. 200) don't burn a full extra tile of MXU work.
    """
    if min_grid <= 1 and b_pad <= max_tile:
        return b_pad          # single grid step, zero padding waste
    best_tb, best_key = None, None
    for tb in (512, 384, 256, 128):
        if tb > max_tile:
            continue
        grid = -(-b_pad // tb)
        if grid < min_grid:
            continue
        waste = grid * tb - b_pad
        key = (waste, 0 if tb % 256 == 0 else 1, -tb)
        if best_key is None or key < best_key:
            best_key, best_tb = key, tb
    if best_tb is None:   # min_grid not reachable with the standard tiles
        best_tb = max(_SUBLANE_BF16,
                      _round_up(-(-b_pad // max(min_grid, 1)), _SUBLANE_BF16))
    return best_tb


def _qnet_kernel(x_ref,
                 w1_ref, b1_ref,
                 w2_ref, b2_ref,
                 w3_ref, b3_ref,
                 wo_ref, bo_ref,
                 out_ref,
                 *, action_size):
    """Fused MLP forward on one batch tile: 3x (Linear+ReLU) + Linear + softmax."""
    x = x_ref[...]  # (TB, S_pad) bf16 — already cast in the wrapper

    # hidden layer 1: (TB, S_pad) @ (S_pad, 512), bf16 MXU, f32 accumulate
    h = jnp.dot(x, w1_ref[...], preferred_element_type=jnp.float32) + b1_ref[...]
    h = jnp.maximum(h, 0.0)

    # hidden layer 2: (TB, 512) @ (512, 512)
    h = jnp.dot(h.astype(jnp.bfloat16), w2_ref[...],
                preferred_element_type=jnp.float32) + b2_ref[...]
    h = jnp.maximum(h, 0.0)

    # hidden layer 3: (TB, 512) @ (512, 256)
    h = jnp.dot(h.astype(jnp.bfloat16), w3_ref[...],
                preferred_element_type=jnp.float32) + b3_ref[...]
    h = jnp.maximum(h, 0.0)

    # output layer: (TB, 256) @ (256, A_pad); lane-dense 128-wide output block
    logits = jnp.dot(h.astype(jnp.bfloat16), wo_ref[...],
                     preferred_element_type=jnp.float32) + bo_ref[...]

    # Mask out the padded action lanes so they get zero probability.
    lane = jax.lax.broadcasted_iota(jnp.int32, logits.shape, dimension=1)
    logits = jnp.where(lane < action_size, logits, -1e30)

    # Numerically stable softmax over the action axis; exact reciprocal keeps
    # rows summing to 1 within f32 rounding.
    m = jnp.max(logits, axis=-1, keepdims=True)
    e = jnp.exp(logits - m)
    denom = jnp.sum(e, axis=-1, keepdims=True)
    out_ref[...] = (e * pl.reciprocal(denom, approx=False)).astype(out_ref.dtype)


@functools.partial(jax.jit,
                   static_argnames=("action_size", "max_tile", "min_grid"))
def qnetwork_forward(x, padded_params, *, action_size, max_tile=512, min_grid=1):
    """x: (batch, state_size) f32. padded_params: output of prepare_params."""
    batch, state_size = x.shape
    p = padded_params
    s_pad = p["w1"].shape[0]
    a_pad = p["bo"].shape[1]
    h1, h2, h3 = p["w1"].shape[1], p["w2"].shape[1], p["w3"].shape[1]

    # Batch tiling: large tiles (see _choose_batch_tile), grid padded to divide.
    b_pad = _round_up(batch, _SUBLANE_BF16)
    tb = _choose_batch_tile(b_pad, max_tile=max_tile, min_grid=min_grid)
    b_pad = _round_up(b_pad, tb)
    grid = b_pad // tb

    # Pad AND cast the activations to bf16 in the wrapper: halves the per-tile
    # activation DMA and removes one in-kernel cast (dtype change, not compute
    # hoisting).
    x_p = jnp.zeros((b_pad, s_pad), jnp.bfloat16)
    x_p = x_p.at[:batch, :state_size].set(x.astype(jnp.bfloat16))

    act_map = lambda i: (i, 0)     # activation / output tiles walk the batch
    const_map = lambda i: (0, 0)   # weights & biases: constant block index ->
                                   # DMA'd once, resident for all grid steps

    kernel = functools.partial(_qnet_kernel, action_size=action_size)

    # Advisory cost estimate so XLA schedules the surrounding pad/slice well.
    flops = 2 * b_pad * (s_pad * h1 + h1 * h2 + h2 * h3 + h3 * a_pad)
    transcendentals = b_pad * a_pad                     # softmax exp
    bytes_accessed = (
        b_pad * s_pad * 2                               # bf16 activations in
        + b_pad * a_pad * 4                             # f32 probabilities out
        + sum(int(v.size) * v.dtype.itemsize for v in p.values()))

    out_padded = pl.pallas_call(
        kernel,
        out_shape=jax.ShapeDtypeStruct((b_pad, a_pad), jnp.float32),
        grid=(grid,),
        in_specs=[
            pl.BlockSpec((tb, s_pad), act_map),
            pl.BlockSpec(p["w1"].shape, const_map),
            pl.BlockSpec(p["b1"].shape, const_map),
            pl.BlockSpec(p["w2"].shape, const_map),
            pl.BlockSpec(p["b2"].shape, const_map),
            pl.BlockSpec(p["w3"].shape, const_map),
            pl.BlockSpec(p["b3"].shape, const_map),
            pl.BlockSpec(p["wo"].shape, const_map),
            pl.BlockSpec(p["bo"].shape, const_map),
        ],
        out_specs=pl.BlockSpec((tb, a_pad), act_map),
        compiler_params=pltpu.CompilerParams(
            dimension_semantics=("parallel",)),
        cost_estimate=pl.CostEstimate(
            flops=flops,
            transcendentals=transcendentals,
            bytes_accessed=bytes_accessed),
    )(x_p, p["w1"], p["b1"], p["w2"], p["b2"], p["w3"], p["b3"],
      p["wo"], p["bo"])

    return out_padded[:batch, :action_size]


def init_qnetwork_params(key, state_size, action_size):
    """kaiming_uniform (fan_in, relu gain) weights, zero biases.

    Matches the explicit init applied in the PyTorch module
    (nn.init.kaiming_uniform_(..., mode='fan_in', nonlinearity='relu') and
    nn.init.zeros_ on biases). Weights stored as (in_features, out_features).
    """
    sizes = [state_size] + HIDDEN_LAYERS + [action_size]
    names = ["1", "2", "3", "o"]
    params = {}
    for name, fan_in, fan_out in zip(names, sizes[:-1], sizes[1:]):
        key, sub = jax.random.split(key)
        bound = jnp.sqrt(6.0 / fan_in)
        params[f"w{name}"] = jax.random.uniform(
            sub, (fan_in, fan_out), jnp.float32, minval=-bound, maxval=bound)
        params[f"b{name}"] = jnp.zeros((1, fan_out), jnp.float32)
    return params


def prepare_params(params, state_size, action_size):
    """Pad weights/biases to lane-friendly shapes; weights cast to bf16."""
    s_pad = _round_up(state_size, _SUBLANE_BF16)
    h1_pad = _round_up(HIDDEN_LAYERS[0], _LANE)   # 400 -> 512
    h2_pad = _round_up(HIDDEN_LAYERS[1], _LANE)   # 400 -> 512
    h3_pad = _round_up(HIDDEN_LAYERS[2], _LANE)   # 256
    a_pad = _round_up(action_size, _LANE)         # -> 128

    def pad_w(w, rows, cols):
        out = jnp.zeros((rows, cols), jnp.float32)
        out = out.at[:w.shape[0], :w.shape[1]].set(w)
        return out.astype(jnp.bfloat16)

    def pad_b(b, cols):
        out = jnp.zeros((1, cols), jnp.float32)
        return out.at[:, :b.shape[1]].set(b)

    return {
        "w1": pad_w(params["w1"], s_pad, h1_pad), "b1": pad_b(params["b1"], h1_pad),
        "w2": pad_w(params["w2"], h1_pad, h2_pad), "b2": pad_b(params["b2"], h2_pad),
        "w3": pad_w(params["w3"], h2_pad, h3_pad), "b3": pad_b(params["b3"], h3_pad),
        "wo": pad_w(params["wo"], h3_pad, a_pad), "bo": pad_b(params["bo"], a_pad),
    }


def _reference_forward_f32(x, params):
    h = jnp.maximum(x @ params["w1"] + params["b1"], 0.0)
    h = jnp.maximum(h @ params["w2"] + params["b2"], 0.0)
    h = jnp.maximum(h @ params["w3"] + params["b3"], 0.0)
    logits = h @ params["wo"] + params["bo"]
    return jax.nn.softmax(logits, axis=1)


def _reference_forward_bf16(x, params):
    """Mirrors the kernel's bf16-input / f32-accumulate matmuls."""
    def lin(a, w, b):
        return jnp.dot(a.astype(jnp.bfloat16), w.astype(jnp.bfloat16),
                       preferred_element_type=jnp.float32) + b
    h = jnp.maximum(lin(x, params["w1"], params["b1"]), 0.0)
    h = jnp.maximum(lin(h, params["w2"], params["b2"]), 0.0)
    h = jnp.maximum(lin(h, params["w3"], params["b3"]), 0.0)
    logits = lin(h, params["wo"], params["bo"])
    return jax.nn.softmax(logits, axis=1)


if __name__ == "__main__":
    key = jax.random.PRNGKey(0)
    state_size = 16
    action_size = 4
    batch = 8

    k_params, k_x, k_x2, k_x3 = jax.random.split(key, 4)
    params = init_qnetwork_params(k_params, state_size, action_size)
    padded = prepare_params(params, state_size, action_size)

    # Small batch: single grid step, whole batch in one tile.
    x = jax.random.normal(k_x, (batch, state_size), jnp.float32)
    out = qnetwork_forward(x, padded, action_size=action_size)
    out = jax.block_until_ready(out)

    assert out.shape == (batch, action_size)
    assert jnp.allclose(jnp.sum(out, axis=1), 1.0, atol=1e-5)
    ref_bf16 = _reference_forward_bf16(x, params)
    ref_f32 = _reference_forward_f32(x, params)
    assert jnp.allclose(out, ref_bf16, atol=1e-4, rtol=1e-4)
    assert jnp.allclose(out, ref_f32, atol=5e-2)  # loose: bf16 weight quantization

    # Medium, awkward batch (200): single 208-row tile — no wasted extra tile.
    batch2 = 200
    x2 = jax.random.normal(k_x2, (batch2, state_size), jnp.float32)
    out2 = qnetwork_forward(x2, padded, action_size=action_size)
    out2 = jax.block_until_ready(out2)
    assert out2.shape == (batch2, action_size)
    assert jnp.allclose(jnp.sum(out2, axis=1), 1.0, atol=1e-5)
    assert jnp.allclose(out2, _reference_forward_bf16(x2, params),
                        atol=1e-4, rtol=1e-4)

    # Same batch forced to >=2 grid steps (v7x two-TensorCore sharding path);
    # must match the single-tile result.
    out2b = qnetwork_forward(x2, padded, action_size=action_size, min_grid=2)
    out2b = jax.block_until_ready(out2b)
    assert jnp.allclose(out2b, out2, atol=1e-6)

    # Large batch: exercises the tiled "parallel" grid (tb=512, grid=2) with
    # VMEM-resident weights across grid steps.
    batch3 = 1000
    x3 = jax.random.normal(k_x3, (batch3, state_size), jnp.float32)
    out3 = qnetwork_forward(x3, padded, action_size=action_size)
    out3 = jax.block_until_ready(out3)
    assert out3.shape == (batch3, action_size)
    assert jnp.allclose(jnp.sum(out3, axis=1), 1.0, atol=1e-5)
    assert jnp.allclose(out3, _reference_forward_bf16(x3, params),
                        atol=1e-4, rtol=1e-4)

    print("KERNEL_OK")
</pallas_src>

<mosaic_0001>
module attributes {stable_mosaic.version = 11 : i64} {
  func.func @_qnet_kernel(%arg0: i32, %arg1: memref<16x16xbf16, #tpu.memory_space<vmem>>, %arg2: memref<16x512xbf16, #tpu.memory_space<vmem>>, %arg3: memref<1x512xf32, #tpu.memory_space<vmem>>, %arg4: memref<512x512xbf16, #tpu.memory_space<vmem>>, %arg5: memref<1x512xf32, #tpu.memory_space<vmem>>, %arg6: memref<512x256xbf16, #tpu.memory_space<vmem>>, %arg7: memref<1x256xf32, #tpu.memory_space<vmem>>, %arg8: memref<256x128xbf16, #tpu.memory_space<vmem>>, %arg9: memref<1x128xf32, #tpu.memory_space<vmem>>, %arg10: memref<16x128xf32, #tpu.memory_space<vmem>>) attributes {dimension_semantics = [#tpu.dimension_semantics<parallel>], iteration_bounds = array<i64: 1>, scalar_prefetch = 0 : i64, scratch_operands = 0 : i64, tpu.core_type = #tpu.core_type<tc>, window_params = [{transform_indices = @transform_0, window_bounds = array<i64: 16, 16>}, {pipeline_mode = #tpu.pipeline_mode<synchronous>, transform_indices = @transform_1, window_bounds = array<i64: 16, 512>}, {pipeline_mode = #tpu.pipeline_mode<synchronous>, transform_indices = @transform_2, window_bounds = array<i64: 1, 512>}, {pipeline_mode = #tpu.pipeline_mode<synchronous>, transform_indices = @transform_3, window_bounds = array<i64: 512, 512>}, {pipeline_mode = #tpu.pipeline_mode<synchronous>, transform_indices = @transform_4, window_bounds = array<i64: 1, 512>}, {pipeline_mode = #tpu.pipeline_mode<synchronous>, transform_indices = @transform_5, window_bounds = array<i64: 512, 256>}, {pipeline_mode = #tpu.pipeline_mode<synchronous>, transform_indices = @transform_6, window_bounds = array<i64: 1, 256>}, {pipeline_mode = #tpu.pipeline_mode<synchronous>, transform_indices = @transform_7, window_bounds = array<i64: 256, 128>}, {pipeline_mode = #tpu.pipeline_mode<synchronous>, transform_indices = @transform_8, window_bounds = array<i64: 1, 128>}, {transform_indices = @transform_9, window_bounds = array<i64: 16, 128>}]} {
    %c0 = arith.constant 0 : index
    %c0_0 = arith.constant 0 : index
    %0 = vector.load %arg1[%c0, %c0_0] : memref<16x16xbf16, #tpu.memory_space<vmem>>, vector<16x16xbf16>
    %c0_1 = arith.constant 0 : index
    %c0_2 = arith.constant 0 : index
    %1 = vector.load %arg2[%c0_1, %c0_2] : memref<16x512xbf16, #tpu.memory_space<vmem>>, vector<16x512xbf16>
    %cst = arith.constant dense<0.000000e+00> : vector<16x512xf32>
    %2 = tpu.matmul %0, %1, %cst {dimension_numbers = #tpu.dot_dimension_numbers<[1], [0], [0], [1], [0, 0, 1, 1], [], []>} : vector<16x16xbf16>, vector<16x512xbf16>, vector<16x512xf32> -> vector<16x512xf32>
    %c0_3 = arith.constant 0 : index
    %c0_4 = arith.constant 0 : index
    %3 = vector.load %arg3[%c0_3, %c0_4] : memref<1x512xf32, #tpu.memory_space<vmem>>, vector<1x512xf32>
    %4 = vector.broadcast %3 : vector<1x512xf32> to vector<16x512xf32>
    %5 = arith.addf %2, %4 : vector<16x512xf32>
    %cst_5 = arith.constant 0.000000e+00 : f32
    %6 = vector.broadcast %cst_5 : f32 to vector<16x512xf32>
    %7 = arith.maximumf %5, %6 : vector<16x512xf32>
    %8 = arith.truncf %7 : vector<16x512xf32> to vector<16x512xbf16>
    %c0_6 = arith.constant 0 : index
    %c0_7 = arith.constant 0 : index
    %9 = vector.load %arg4[%c0_6, %c0_7] : memref<512x512xbf16, #tpu.memory_space<vmem>>, vector<512x512xbf16>
    %cst_8 = arith.constant dense<0.000000e+00> : vector<16x512xf32>
    %10 = tpu.matmul %8, %9, %cst_8 {dimension_numbers = #tpu.dot_dimension_numbers<[1], [0], [0], [1], [0, 0, 1, 1], [], []>} : vector<16x512xbf16>, vector<512x512xbf16>, vector<16x512xf32> -> vector<16x512xf32>
    %c0_9 = arith.constant 0 : index
    %c0_10 = arith.constant 0 : index
    %11 = vector.load %arg5[%c0_9, %c0_10] : memref<1x512xf32, #tpu.memory_space<vmem>>, vector<1x512xf32>
    %12 = vector.broadcast %11 : vector<1x512xf32> to vector<16x512xf32>
    %13 = arith.addf %10, %12 : vector<16x512xf32>
    %cst_11 = arith.constant 0.000000e+00 : f32
    %14 = vector.broadcast %cst_11 : f32 to vector<16x512xf32>
    %15 = arith.maximumf %13, %14 : vector<16x512xf32>
    %16 = arith.truncf %15 : vector<16x512xf32> to vector<16x512xbf16>
    %c0_12 = arith.constant 0 : index
    %c0_13 = arith.constant 0 : index
    %17 = vector.load %arg6[%c0_12, %c0_13] : memref<512x256xbf16, #tpu.memory_space<vmem>>, vector<512x256xbf16>
    %cst_14 = arith.constant dense<0.000000e+00> : vector<16x256xf32>
    %18 = tpu.matmul %16, %17, %cst_14 {dimension_numbers = #tpu.dot_dimension_numbers<[1], [0], [0], [1], [0, 0, 1, 1], [], []>} : vector<16x512xbf16>, vector<512x256xbf16>, vector<16x256xf32> -> vector<16x256xf32>
    %c0_15 = arith.constant 0 : index
    %c0_16 = arith.constant 0 : index
    %19 = vector.load %arg7[%c0_15, %c0_16] : memref<1x256xf32, #tpu.memory_space<vmem>>, vector<1x256xf32>
    %20 = vector.broadcast %19 : vector<1x256xf32> to vector<16x256xf32>
    %21 = arith.addf %18, %20 : vector<16x256xf32>
    %cst_17 = arith.constant 0.000000e+00 : f32
    %22 = vector.broadcast %cst_17 : f32 to vector<16x256xf32>
    %23 = arith.maximumf %21, %22 : vector<16x256xf32>
    %24 = arith.truncf %23 : vector<16x256xf32> to vector<16x256xbf16>
    %c0_18 = arith.constant 0 : index
    %c0_19 = arith.constant 0 : index
    %25 = vector.load %arg8[%c0_18, %c0_19] : memref<256x128xbf16, #tpu.memory_space<vmem>>, vector<256x128xbf16>
    %cst_20 = arith.constant dense<0.000000e+00> : vector<16x128xf32>
    %26 = tpu.matmul %24, %25, %cst_20 {dimension_numbers = #tpu.dot_dimension_numbers<[1], [0], [0], [1], [0, 0, 1, 1], [], []>} : vector<16x256xbf16>, vector<256x128xbf16>, vector<16x128xf32> -> vector<16x128xf32>
    %c0_21 = arith.constant 0 : index
    %c0_22 = arith.constant 0 : index
    %27 = vector.load %arg9[%c0_21, %c0_22] : memref<1x128xf32, #tpu.memory_space<vmem>>, vector<1x128xf32>
    %28 = vector.broadcast %27 : vector<1x128xf32> to vector<16x128xf32>
    %29 = arith.addf %26, %28 : vector<16x128xf32>
    %30 = tpu.iota {dimensions = array<i32: 1>} : vector<16x128xi32>
    %c4_i32 = arith.constant 4 : i32
    %31 = vector.broadcast %c4_i32 : i32 to vector<16x128xi32>
    %32 = arith.cmpi slt, %30, %31 : vector<16x128xi32>
    %cst_23 = arith.constant -1.000000e+30 : f32
    %33 = vector.broadcast %cst_23 : f32 to vector<16x128xf32>
    %34 = arith.select %32, %29, %33 : vector<16x128xi1>, vector<16x128xf32>
    %cst_24 = arith.constant dense<0xFF800000> : vector<16xf32>
    %35 = vector.multi_reduction <maximumf>, %34, %cst_24 [1] : vector<16x128xf32> to vector<16xf32>
    %36 = vector.shape_cast %35 : vector<16xf32> to vector<16x1xf32>
    %37 = vector.broadcast %36 : vector<16x1xf32> to vector<16x128xf32>
    %38 = arith.subf %34, %37 : vector<16x128xf32>
    %39 = math.exp %38 : vector<16x128xf32>
    %cst_25 = arith.constant dense<0.000000e+00> : vector<16xf32>
    %40 = vector.multi_reduction <add>, %39, %cst_25 [1] : vector<16x128xf32> to vector<16xf32>
    %41 = vector.shape_cast %40 : vector<16xf32> to vector<16x1xf32>
    %42 = tpu.reciprocal %41 : vector<16x1xf32> -> vector<16x1xf32>
    %43 = vector.broadcast %42 : vector<16x1xf32> to vector<16x128xf32>
    %44 = arith.mulf %39, %43 : vector<16x128xf32>
    %c0_26 = arith.constant 0 : index
    %c0_27 = arith.constant 0 : index
    %45 = vector.load %arg10[%c0_26, %c0_27] : memref<16x128xf32, #tpu.memory_space<vmem>>, vector<16x128xf32>
    tpu.vector_store %arg10[%c0_26, %c0_27], %44 {strides = array<i32>} : memref<16x128xf32, #tpu.memory_space<vmem>>, vector<16x128xf32>,
    return
  }
  func.func @transform_0(%arg0: i32) -> (i32, i32) {
    %c0_i32 = arith.constant 0 : i32
    %c0_i32_0 = arith.constant 0 : i32
    return %arg0, %c0_i32 : i32, i32
  }
  func.func @transform_1(%arg0: i32) -> (i32, i32) {
    %c0_i32 = arith.constant 0 : i32
    %c0_i32_0 = arith.constant 0 : i32
    %c0_i32_1 = arith.constant 0 : i32
    return %c0_i32, %c0_i32_0 : i32, i32
  }
  func.func @transform_2(%arg0: i32) -> (i32, i32) {
    %c0_i32 = arith.constant 0 : i32
    %c0_i32_0 = arith.constant 0 : i32
    %c0_i32_1 = arith.constant 0 : i32
    return %c0_i32, %c0_i32_0 : i32, i32
  }
  func.func @transform_3(%arg0: i32) -> (i32, i32) {
    %c0_i32 = arith.constant 0 : i32
    %c0_i32_0 = arith.constant 0 : i32
    %c0_i32_1 = arith.constant 0 : i32
    return %c0_i32, %c0_i32_0 : i32, i32
  }
  func.func @transform_4(%arg0: i32) -> (i32, i32) {
    %c0_i32 = arith.constant 0 : i32
    %c0_i32_0 = arith.constant 0 : i32
    %c0_i32_1 = arith.constant 0 : i32
    return %c0_i32, %c0_i32_0 : i32, i32
  }
  func.func @transform_5(%arg0: i32) -> (i32, i32) {
    %c0_i32 = arith.constant 0 : i32
    %c0_i32_0 = arith.constant 0 : i32
    %c0_i32_1 = arith.constant 0 : i32
    return %c0_i32, %c0_i32_0 : i32, i32
  }
  func.func @transform_6(%arg0: i32) -> (i32, i32) {
    %c0_i32 = arith.constant 0 : i32
    %c0_i32_0 = arith.constant 0 : i32
    %c0_i32_1 = arith.constant 0 : i32
    return %c0_i32, %c0_i32_0 : i32, i32
  }
  func.func @transform_7(%arg0: i32) -> (i32, i32) {
    %c0_i32 = arith.constant 0 : i32
    %c0_i32_0 = arith.constant 0 : i32
    %c0_i32_1 = arith.constant 0 : i32
    return %c0_i32, %c0_i32_0 : i32, i32
  }
  func.func @transform_8(%arg0: i32) -> (i32, i32) {
    %c0_i32 = arith.constant 0 : i32
    %c0_i32_0 = arith.constant 0 : i32
    %c0_i32_1 = arith.constant 0 : i32
    return %c0_i32, %c0_i32_0 : i32, i32
  }
  func.func @transform_9(%arg0: i32) -> (i32, i32) {
    %c0_i32 = arith.constant 0 : i32
    %c0_i32_0 = arith.constant 0 : i32
    return %arg0, %c0_i32 : i32, i32
  }
}

</mosaic_0001>

<llo_original>
// kernel: qnetwork_forward.1
$region0: #{qnetwork_forward.1}
  #allocation0 [shape = 'u32[]', space=smem, size = 0x4, offset = 0x4, fixed_abs, tag = 'smem constant byte address 0x4 - core index']
  #allocation1 [shape = 'u32[144,128]{1,0:T(1,128)}', space=vmem, size = 0x12000, scoped, tag = 'internal scratch']
  %s0 = inlined_call_operand.vmem [shape: bf16[16,16], index: 0, kind: input, shape index: {}]
  %s1 = inlined_call_operand.vmem [shape: bf16[16,512], index: 1, kind: input, shape index: {}]
  %s2 = inlined_call_operand.vmem [shape: f32[1,512], index: 2, kind: input, shape index: {}]
  %s3 = inlined_call_operand.hbm [shape: bf16[512,512], index: 3, kind: input, shape index: {}]
  %s4 = inlined_call_operand.vmem [shape: f32[1,512], index: 4, kind: input, shape index: {}]
  %s5 = inlined_call_operand.hbm [shape: bf16[512,256], index: 5, kind: input, shape index: {}]
  %s6 = inlined_call_operand.vmem [shape: f32[1,256], index: 6, kind: input, shape index: {}]
  %s7 = inlined_call_operand.hbm [shape: bf16[256,128], index: 7, kind: input, shape index: {}]
  %s8 = inlined_call_operand.vmem [shape: f32[1,128], index: 8, kind: input, shape index: {}]
  %s9 = inlined_call_operand.vmem [shape: f32[16,128], index: 9, kind: output, shape index: {}]
  %s10 = sld [smem:[#allocation0]]
  $region58: #{qnetwork_forward.1} parent=0
    _
  %s12 = ssub.s32 1, %s10
  %s13 = scalar_select 0, %s12, %s10
  $region1: #{qnetwork_forward.1} parent=0
    #allocation2 [shape = 'u8[524288]{0}', space=vmem, size = 0x80000, scoped, tag = 'input window, operand 3, single buffered']
    #allocation3 [shape = 's32[1]{0}', space=sflag, size = 0x4, scoped, tag = 'scoped memory for qnetwork_forward.1']
    #allocation4 [shape = 'u8[262144]{0}', space=vmem, size = 0x40000, scoped, tag = 'input window, operand 5, single buffered']
    #allocation5 [shape = 's32[1]{0}', space=sflag, size = 0x4, scoped, tag = 'scoped memory for qnetwork_forward.1']
    #allocation6 [shape = 'u8[65536]{0}', space=vmem, size = 0x10000, scoped, tag = 'input window, operand 7, single buffered']
    %14 = vsyncpa [#allocation3], 0
    %15 = vsyncpa [#allocation5], 0
    // Predicated region
    $region2: #{qnetwork_forward.1} parent=1 // pred_check
      _
    $region3: #{qnetwork_forward.1} parent=1 // pred_check_branch
      %17 = sbr.rel (0) target = $region5
    $region4: #{qnetwork_forward.1} parent=1 // pred_region
      _
    $region5: #{qnetwork_forward.1} parent=1 // pred_fallthru
      _
    // Predicated region
    $region6: #{qnetwork_forward.1} parent=1 // pred_check
      _
    $region7: #{qnetwork_forward.1} parent=1 // pred_check_branch
      %19 = sbr.rel (0) target = $region9
    $region8: #{qnetwork_forward.1} parent=1 // pred_region
      _
    $region9: #{qnetwork_forward.1} parent=1 // pred_fallthru
      _
    // Predicated region
    $region10: #{qnetwork_forward.1} parent=1 // pred_check
      _
    $region11: #{qnetwork_forward.1} parent=1 // pred_check_branch
      %21 = sbr.rel (0) target = $region13
    $region12: #{qnetwork_forward.1} parent=1 // pred_region
      _
    $region13: #{qnetwork_forward.1} parent=1 // pred_fallthru
      _
    // Predicated region
    $region14: #{qnetwork_forward.1} parent=1 // pred_check
      _
    $region15: #{qnetwork_forward.1} parent=1 // pred_check_branch
      %23 = sbr.rel (0) target = $region17
    $region16: #{qnetwork_forward.1} parent=1 // pred_region
      %s25 = ssub.s32 16384, 16384
      %26 = vsyncadd [#allocation3], %s25
      %s27 = sshll.u32 [#allocation2], 4
      %s28 = int_to_ptr.vmem [resolvable:$true] %s27
      %33 = dma.hbm_to_vmem [thread:$0]  %s3, 16384, %s28, [#allocation3], 256, 256, 16
    $region17: #{qnetwork_forward.1} parent=1 // pred_fallthru
      _
    // Predicated region
    $region18: #{qnetwork_forward.1} parent=1 // pred_check
      _
    $region19: #{qnetwork_forward.1} parent=1 // pred_check_branch
      %35 = sbr.rel (0) target = $region21
    $region20: #{qnetwork_forward.1} parent=1 // pred_region
      _
    $region21: #{qnetwork_forward.1} parent=1 // pred_fallthru
      _
    // Predicated region
    $region22: #{qnetwork_forward.1} parent=1 // pred_check
      _
    $region23: #{qnetwork_forward.1} parent=1 // pred_check_branch
      %37 = sbr.rel (0) target = $region25
    $region24: #{qnetwork_forward.1} parent=1 // pred_region
      %s39 = ssub.s32 8192, 8192
      %40 = vsyncadd [#allocation5], %s39
      %s41 = sshll.u32 [#allocation4], 4
      %s42 = int_to_ptr.vmem [resolvable:$true] %s41
      %47 = dma.hbm_to_vmem [thread:$0]  %s5, 8192, %s42, [#allocation5], 128, 128, 8
    $region25: #{qnetwork_forward.1} parent=1 // pred_fallthru
      _
    // Predicated region
    $region26: #{qnetwork_forward.1} parent=1 // pred_check
      _
    $region27: #{qnetwork_forward.1} parent=1 // pred_check_branch
      %49 = sbr.rel (0) target = $region29
    $region28: #{qnetwork_forward.1} parent=1 // pred_region
      _
    $region29: #{qnetwork_forward.1} parent=1 // pred_fallthru
      _
    // Predicated region
    $region30: #{qnetwork_forward.1} parent=1 // pred_check
      _
    $region31: #{qnetwork_forward.1} parent=1 // pred_check_branch
      %51 = sbr.rel (0) target = $region33
    $region32: #{qnetwork_forward.1} parent=1 // pred_region
      %s53 = ssub.s32 2048, 2048
      %54 = vsyncadd [#allocation5], %s53
      %s55 = sshll.u32 [#allocation6], 4
      %s56 = int_to_ptr.vmem [resolvable:$true] %s55
      %61 = dma.hbm_to_vmem [thread:$0]  %s7, 2048, %s56, [#allocation5], 64, 64, 4
    $region33: #{qnetwork_forward.1} parent=1 // pred_fallthru
      _
    // Predicated region
    $region34: #{qnetwork_forward.1} parent=1 // pred_check
      _
    $region35: #{qnetwork_forward.1} parent=1 // pred_check_branch
      %63 = sbr.rel (0) target = $region37
    $region36: #{qnetwork_forward.1} parent=1 // pred_region
      _
    $region37: #{qnetwork_forward.1} parent=1 // pred_fallthru
      _
    // Predicated region
    $region38: #{qnetwork_forward.1} parent=1 // pred_check
      _
    $region39: #{qnetwork_forward.1} parent=1 // pred_check_branch
      %65 = sbr.rel (0) target = $region41
    $region40: #{qnetwork_forward.1} parent=1 // pred_region
      %66 = dma.done [#allocation3], 16384
    $region41: #{qnetwork_forward.1} parent=1 // pred_fallthru
      _
    // Predicated region
    $region42: #{qnetwork_forward.1} parent=1 // pred_check
      _
    $region43: #{qnetwork_forward.1} parent=1 // pred_check_branch
      %68 = sbr.rel (0) target = $region45
    $region44: #{qnetwork_forward.1} parent=1 // pred_region
      %69 = dma.done [#allocation5], 8192
    $region45: #{qnetwork_forward.1} parent=1 // pred_fallthru
      _
    // Predicated region
    $region46: #{qnetwork_forward.1} parent=1 // pred_check
      _
    $region47: #{qnetwork_forward.1} parent=1 // pred_check_branch
      %71 = sbr.rel (0) target = $region49
    $region48: #{qnetwork_forward.1} parent=1 // pred_region
      %72 = dma.done [#allocation5], 2048
    $region49: #{qnetwork_forward.1} parent=1 // pred_fallthru
      _
    %v74 = vld [vmem:[%s0] sm:$0xf]
    %v75 = vld [vmem:[%s0 + $0x4] sm:$0xf]
    %v76 = vld [vmem:[%s1] sm:$0xff]
    %v77 = vld [vmem:[%s1 + $0x8] sm:$0xff]
    %v78 = vld [vmem:[%s1 + $0x10] sm:$0xff]
    %v79 = vld [vmem:[%s1 + $0x18] sm:$0xff]
    %v80 = vld [vmem:[%s2] sm:$0xf]
    %v82 = vlaneseq
    %v83 = vshrl.u32 %v82, 7
    %v84 = vsub.s32 0, %v83
    %v85 = vrot.slane %v80, %v84
    %v86 = vlaneseq
    %v87 = vshrl.u32 %v86, 7
    %v88 = vsub.s32 1, %v87
    %v89 = vrot.slane %v80, %v88
    %v90 = vlaneseq
    %v91 = vshrl.u32 %v90, 7
    %v92 = vsub.s32 2, %v91
    %v93 = vrot.slane %v80, %v92
    %v94 = vlaneseq
    %v95 = vshrl.u32 %v94, 7
    %v96 = vsub.s32 3, %v95
    %v97 = vrot.slane %v80, %v96
    %v104 = vunpack.c.l.b16 %v74
    %v105 = vunpack.c.l.b16 %v75
    %v106 = vpack.c.b16 %v105, %v104
    %v111 = vunpack.c.l.b16 %v76
    %v112 = vunpack.c.h.b16 %v76
    %v113 = vunpack.c.l.b16 %v77
    %v114 = vunpack.c.h.b16 %v77
    %v115 = vunpack.c.l.b16 %v78
    %v116 = vunpack.c.h.b16 %v78
    %v117 = vunpack.c.l.b16 %v79
    %v118 = vunpack.c.h.b16 %v79
    %v119 = vpack.c.b16 %v115, %v111
    %v120 = vpack.c.b16 %v116, %v112
    %v121 = vpack.c.b16 %v117, %v113
    %v122 = vpack.c.b16 %v118, %v114
    %vm127 = vcmask 130048
    %v129 = vsel %vm127, %v106, 0
    %131 = vmatprep.subr.bf16.mxu0 %v120
    %132 = vmatpush1.bf16.msra.mxu0 %v119
    %133 = vmatprep.subr.bf16.mxu0 0
    %134 = vmatpush1.bf16.msra.mxu0 0
    %135 = vmatprep.subr.bf16.mxu0 0
    %136 = vmatpush1.bf16.msra.mxu0 0
    %137 = vmatprep.subr.bf16.mxu0 0
    %138 = vmatpush1.bf16.msra.mxu0 0
    %139 = vmatprep.subr.bf16.mxu0 0
    %140 = vmatpush1.bf16.msra.mxu0 0
    %141 = vmatprep.subr.bf16.mxu0 0
    %142 = vmatpush1.bf16.msra.mxu0 0
    %143 = vmatprep.subr.bf16.mxu0 0
    %144 = vmatpush1.bf16.msra.mxu0 0
    %145 = vmatprep.subr.bf16.mxu0 0
    %146 = vmatpush1.bf16.msra.mxu0 0
    %147 = vmatprep.subr.bf16.mxu0 0
    %148 = vmatpush1.bf16.msra.mxu0 0
    %149 = vmatprep.subr.bf16.mxu0 0
    %150 = vmatpush1.bf16.msra.mxu0 0
    %151 = vmatprep.subr.bf16.mxu0 0
    %152 = vmatpush1.bf16.msra.mxu0 0
    %153 = vmatprep.subr.bf16.mxu0 0
    %154 = vmatpush1.bf16.msra.mxu0 0
    %155 = vmatprep.subr.bf16.mxu0 0
    %156 = vmatpush1.bf16.msra.mxu0 0
    %157 = vmatprep.subr.bf16.mxu0 0
    %158 = vmatpush1.bf16.msra.mxu0 0
    %159 = vmatprep.subr.bf16.mxu0 0
    %160 = vmatpush1.bf16.msra.mxu0 0
    %161 = vmatprep.subr.bf16.mxu0 0
    %162 = vmatpush1.bf16.msra.mxu0 0
    %163 = vmatprep.mubr.bf16.mxu0 0
    %164 = vmatmul.mubr.bf16.gmra.mrb[0].mxu0 %v129
    %v165 = vpop.f32.mrb[0].mxu0
    %v166 = vadd.f32 %v85, %v165
    %v167 = vpop.f32.mrb[0].mxu0
    %v168 = vadd.f32 %v89, %v167
    %v169 = vpop.f32.mrb[0].mxu0
    %v170 = vadd.f32 %v85, %v169
    %v171 = vpop.f32.mrb[0].mxu0
    %v172 = vadd.f32 %v89, %v171
    %173 = vdwg.mxu0
    %174 = vmatprep.subr.bf16.mxu0 %v122
    %175 = vmatpush1.bf16.msra.mxu0 %v121
    %176 = vmatprep.subr.bf16.mxu0 0
    %177 = vmatpush1.bf16.msra.mxu0 0
    %178 = vmatprep.subr.bf16.mxu0 0
    %179 = vmatpush1.bf16.msra.mxu0 0
    %180 = vmatprep.subr.bf16.mxu0 0
    %181 = vmatpush1.bf16.msra.mxu0 0
    %182 = vmatprep.subr.bf16.mxu0 0
    %183 = vmatpush1.bf16.msra.mxu0 0
    %184 = vmatprep.subr.bf16.mxu0 0
    %185 = vmatpush1.bf16.msra.mxu0 0
    %186 = vmatprep.subr.bf16.mxu0 0
    %187 = vmatpush1.bf16.msra.mxu0 0
    %188 = vmatprep.subr.bf16.mxu0 0
    %189 = vmatpush1.bf16.msra.mxu0 0
    %190 = vmatprep.subr.bf16.mxu0 0
    %191 = vmatpush1.bf16.msra.mxu0 0
    %192 = vmatprep.subr.bf16.mxu0 0
    %193 = vmatpush1.bf16.msra.mxu0 0
    %194 = vmatprep.subr.bf16.mxu0 0
    %195 = vmatpush1.bf16.msra.mxu0 0
    %196 = vmatprep.subr.bf16.mxu0 0
    %197 = vmatpush1.bf16.msra.mxu0 0
    %198 = vmatprep.subr.bf16.mxu0 0
    %199 = vmatpush1.bf16.msra.mxu0 0
    %200 = vmatprep.subr.bf16.mxu0 0
    %201 = vmatpush1.bf16.msra.mxu0 0
    %202 = vmatprep.subr.bf16.mxu0 0
    %203 = vmatpush1.bf16.msra.mxu0 0
    %204 = vmatprep.subr.bf16.mxu0 0
    %205 = vmatpush1.bf16.msra.mxu0 0
    %206 = vmatprep.mubr.bf16.mxu0 0
    %207 = vmatmul.mubr.bf16.gmra.mrb[0].mxu0 %v129
    %v208 = vpop.f32.mrb[0].mxu0
    %v209 = vadd.f32 %v93, %v208
    %v210 = vpop.f32.mrb[0].mxu0
    %v211 = vadd.f32 %v97, %v210
    %v212 = vpop.f32.mrb[0].mxu0
    %v213 = vadd.f32 %v93, %v212
    %v214 = vpop.f32.mrb[0].mxu0
    %v215 = vadd.f32 %v97, %v214
    %216 = vdwg.mxu0
    %v217 = vmax.f32 %v166, 0.0
    %v218 = vmax.f32 %v168, 0.0
    %v219 = vmax.f32 %v209, 0.0
    %v220 = vmax.f32 %v211, 0.0
    %v221 = vmax.f32 %v170, 0.0
    %v222 = vmax.f32 %v172, 0.0
    %v223 = vmax.f32 %v213, 0.0
    %v224 = vmax.f32 %v215, 0.0
    %v225 = vpack.c.bf16 %v221, %v217
    %v226 = vpack.c.bf16 %v222, %v218
    %v227 = vpack.c.bf16 %v223, %v219
    %v228 = vpack.c.bf16 %v224, %v220
    %v229 = vld [vmem:[#allocation2] sm:$0xff]
    %v230 = vld [vmem:[#allocation2 + $0x8] sm:$0xff]
    %v231 = vld [vmem:[#allocation2 + $0x10] sm:$0xff]
    %v232 = vld [vmem:[#allocation2 + $0x18] sm:$0xff]
    %v233 = vld [vmem:[#allocation2 + $0x20] sm:$0xff]
    %v234 = vld [vmem:[#allocation2 + $0x28] sm:$0xff]
    %v235 = vld [vmem:[#allocation2 + $0x30] sm:$0xff]
    %v236 = vld [vmem:[#allocation2 + $0x38] sm:$0xff]
    %v237 = vld [vmem:[#allocation2 + $0x40] sm:$0xff]
    %v238 = vld [vmem:[#allocation2 + $0x48] sm:$0xff]
    %v239 = vld [vmem:[#allocation2 + $0x50] sm:$0xff]
    %v240 = vld [vmem:[#allocation2 + $0x58] sm:$0xff]
    %v241 = vld [vmem:[#allocation2 + $0x60] sm:$0xff]
    %v242 = vld [vmem:[#allocation2 + $0x68] sm:$0xff]
    %v243 = vld [vmem:[#allocation2 + $0x70] sm:$0xff]
    %v244 = vld [vmem:[#allocation2 + $0x78] sm:$0xff]
    %v245 = vld [vmem:[#allocation2 + $0x80] sm:$0xff]
    %v246 = vld [vmem:[#allocation2 + $0x88] sm:$0xff]
    %v247 = vld [vmem:[#allocation2 + $0x90] sm:$0xff]
    %v248 = vld [vmem:[#allocation2 + $0x98] sm:$0xff]
    %v249 = vld [vmem:[#allocation2 + $0xa0] sm:$0xff]
    %v250 = vld [vmem:[#allocation2 + $0xa8] sm:$0xff]
    %v251 = vld [vmem:[#allocation2 + $0xb0] sm:$0xff]
    %v252 = vld [vmem:[#allocation2 + $0xb8] sm:$0xff]
    %v253 = vld [vmem:[#allocation2 + $0xc0] sm:$0xff]
    %v254 = vld [vmem:[#allocation2 + $0xc8] sm:$0xff]
    %v255 = vld [vmem:[#allocation2 + $0xd0] sm:$0xff]
    %v256 = vld [vmem:[#allocation2 + $0xd8] sm:$0xff]
    %v257 = vld [vmem:[#allocation2 + $0xe0] sm:$0xff]
    %v258 = vld [vmem:[#allocation2 + $0xe8] sm:$0xff]
    %v259 = vld [vmem:[#allocation2 + $0xf0] sm:$0xff]
    %v260 = vld [vmem:[#allocation2 + $0xf8] sm:$0xff]
    %v261 = vld [vmem:[#allocation2 + $0x100] sm:$0xff]
    %v262 = vld [vmem:[#allocation2 + $0x108] sm:$0xff]
    %v263 = vld [vmem:[#allocation2 + $0x110] sm:$0xff]
    %v264 = vld [vmem:[#allocation2 + $0x118] sm:$0xff]
    %v265 = vld [vmem:[#allocation2 + $0x120] sm:$0xff]
    %v266 = vld [vmem:[#allocation2 + $0x128] sm:$0xff]
    %v267 = vld [vmem:[#allocation2 + $0x130] sm:$0xff]
    %v268 = vld [vmem:[#allocation2 + $0x138] sm:$0xff]
    %v269 = vld [vmem:[#allocation2 + $0x140] sm:$0xff]
    %v270 = vld [vmem:[#allocation2 + $0x148] sm:$0xff]
    %v271 = vld [vmem:[#allocation2 + $0x150] sm:$0xff]
    %v272 = vld [vmem:[#allocation2 + $0x158] sm:$0xff]
    %v273 = vld [vmem:[#allocation2 + $0x160] sm:$0xff]
    %v274 = vld [vmem:[#allocation2 + $0x168] sm:$0xff]
    %v275 = vld [vmem:[#allocation2 + $0x170] sm:$0xff]
    %v276 = vld [vmem:[#allocation2 + $0x178] sm:$0xff]
    %v277 = vld [vmem:[#allocation2 + $0x180] sm:$0xff]
    %v278 = vld [vmem:[#allocation2 + $0x188] sm:$0xff]
    %v279 = vld [vmem:[#allocation2 + $0x190] sm:$0xff]
    %v280 = vld [vmem:[#allocation2 + $0x198] sm:$0xff]
    %v281 = vld [vmem:[#allocation2 + $0x1a0] sm:$0xff]
    %v282 = vld [vmem:[#allocation2 + $0x1a8] sm:$0xff]
    %v283 = vld [vmem:[#allocation2 + $0x1b0] sm:$0xff]
    %v284 = vld [vmem:[#allocation2 + $0x1b8] sm:$0xff]
    %v285 = vld [vmem:[#allocation2 + $0x1c0] sm:$0xff]
    %v286 = vld [vmem:[#allocation2 + $0x1c8] sm:$0xff]
    %v287 = vld [vmem:[#allocation2 + $0x1d0] sm:$0xff]
    %v288 = vld [vmem:[#allocation2 + $0x1d8] sm:$0xff]
    %v289 = vld [vmem:[#allocation2 + $0x1e0] sm:$0xff]
    %v290 = vld [vmem:[#allocation2 + $0x1e8] sm:$0xff]
    %v291 = vld [vmem:[#allocation2 + $0x1f0] sm:$0xff]
    %v292 = vld [vmem:[#allocation2 + $0x1f8] sm:$0xff]
    %v293 = vld [vmem:[#allocation2 + $0x200] sm:$0xff]
    %v294 = vld [vmem:[#allocation2 + $0x208] sm:$0xff]
    %v295 = vld [vmem:[#allocation2 + $0x210] sm:$0xff]
    %v296 = vld [vmem:[#allocation2 + $0x218] sm:$0xff]
    %v297 = vld [vmem:[#allocation2 + $0x220] sm:$0xff]
    %v298 = vld [vmem:[#allocation2 + $0x228] sm:$0xff]
    %v299 = vld [vmem:[#allocation2 + $0x230] sm:$0xff]
    %v300 = vld [vmem:[#allocation2 + $0x238] sm:$0xff]
    %v301 = vld [vmem:[#allocation2 + $0x240] sm:$0xff]
    %v302 = vld [vmem:[#allocation2 + $0x248] sm:$0xff]
    %v303 = vld [vmem:[#allocation2 + $0x250] sm:$0xff]
    %v304 = vld [vmem:[#allocation2 + $0x258] sm:$0xff]
    %v305 = vld [vmem:[#allocation2 + $0x260] sm:$0xff]
    %v306 = vld [vmem:[#allocation2 + $0x268] sm:$0xff]
    %v307 = vld [vmem:[#allocation2 + $0x270] sm:$0xff]
    %v308 = vld [vmem:[#allocation2 + $0x278] sm:$0xff]
    %v309 = vld [vmem:[#allocation2 + $0x280] sm:$0xff]
    %v310 = vld [vmem:[#allocation2 + $0x288] sm:$0xff]
    %v311 = vld [vmem:[#allocation2 + $0x290] sm:$0xff]
    %v312 = vld [vmem:[#allocation2 + $0x298] sm:$0xff]
    %v313 = vld [vmem:[#allocation2 + $0x2a0] sm:$0xff]
    %v314 = vld [vmem:[#allocation2 + $0x2a8] sm:$0xff]
    %v315 = vld [vmem:[#allocation2 + $0x2b0] sm:$0xff]
    %v316 = vld [vmem:[#allocation2 + $0x2b8] sm:$0xff]
    %v317 = vld [vmem:[#allocation2 + $0x2c0] sm:$0xff]
    %v318 = vld [vmem:[#allocation2 + $0x2c8] sm:$0xff]
    %v319 = vld [vmem:[#allocation2 + $0x2d0] sm:$0xff]
    %v320 = vld [vmem:[#allocation2 + $0x2d8] sm:$0xff]
    %v321 = vld [vmem:[#allocation2 + $0x2e0] sm:$0xff]
    %v322 = vld [vmem:[#allocation2 + $0x2e8] sm:$0xff]
    %v323 = vld [vmem:[#allocation2 + $0x2f0] sm:$0xff]
    %v324 = vld [vmem:[#allocation2 + $0x2f8] sm:$0xff]
    %v325 = vld [vmem:[#allocation2 + $0x300] sm:$0xff]
    %v326 = vld [vmem:[#allocation2 + $0x308] sm:$0xff]
    %v327 = vld [vmem:[#allocation2 + $0x310] sm:$0xff]
    %v328 = vld [vmem:[#allocation2 + $0x318] sm:$0xff]
    %v329 = vld [vmem:[#allocation2 + $0x320] sm:$0xff]
    %v330 = vld [vmem:[#allocation2 + $0x328] sm:$0xff]
    %v331 = vld [vmem:[#allocation2 + $0x330] sm:$0xff]
    %v332 = vld [vmem:[#allocation2 + $0x338] sm:$0xff]
    %v333 = vld [vmem:[#allocation2 + $0x340] sm:$0xff]
    %v334 = vld [vmem:[#allocation2 + $0x348] sm:$0xff]
    %v335 = vld [vmem:[#allocation2 + $0x350] sm:$0xff]
    %v336 = vld [vmem:[#allocation2 + $0x358] sm:$0xff]
    %v337 = vld [vmem:[#allocation2 + $0x360] sm:$0xff]
    %v338 = vld [vmem:[#allocation2 + $0x368] sm:$0xff]
    %v339 = vld [vmem:[#allocation2 + $0x370] sm:$0xff]
    %v340 = vld [vmem:[#allocation2 + $0x378] sm:$0xff]
    %v341 = vld [vmem:[#allocation2 + $0x380] sm:$0xff]
    %v342 = vld [vmem:[#allocation2 + $0x388] sm:$0xff]
    %v343 = vld [vmem:[#allocation2 + $0x390] sm:$0xff]
    %v344 = vld [vmem:[#allocation2 + $0x398] sm:$0xff]
    %v345 = vld [vmem:[#allocation2 + $0x3a0] sm:$0xff]
    %v346 = vld [vmem:[#allocation2 + $0x3a8] sm:$0xff]
    %v347 = vld [vmem:[#allocation2 + $0x3b0] sm:$0xff]
    %v348 = vld [vmem:[#allocation2 + $0x3b8] sm:$0xff]
    %v349 = vld [vmem:[#allocation2 + $0x3c0] sm:$0xff]
    %v350 = vld [vmem:[#allocation2 + $0x3c8] sm:$0xff]
    %v351 = vld [vmem:[#allocation2 + $0x3d0] sm:$0xff]
    %v352 = vld [vmem:[#allocation2 + $0x3d8] sm:$0xff]
    %v353 = vld [vmem:[#allocation2 + $0x3e0] sm:$0xff]
    %v354 = vld [vmem:[#allocation2 + $0x3e8] sm:$0xff]
    %v355 = vld [vmem:[#allocation2 + $0x3f0] sm:$0xff]
    %v356 = vld [vmem:[#allocation2 + $0x3f8] sm:$0xff]
    %v357 = vld [vmem:[%s4] sm:$0xf]
    %v359 = vlaneseq
    %v360 = vshrl.u32 %v359, 7
    %v361 = vsub.s32 0, %v360
    %v362 = vrot.slane %v357, %v361
    %v363 = vlaneseq
    %v364 = vshrl.u32 %v363, 7
    %v365 = vsub.s32 1, %v364
    %v366 = vrot.slane %v357, %v365
    %v367 = vlaneseq
    %v368 = vshrl.u32 %v367, 7
    %v369 = vsub.s32 2, %v368
    %v370 = vrot.slane %v357, %v369
    %v371 = vlaneseq
    %v372 = vshrl.u32 %v371, 7
    %v373 = vsub.s32 3, %v372
    %v374 = vrot.slane %v357, %v373
    %v507 = vunpack.c.l.b16 %v229
    %v508 = vunpack.c.h.b16 %v229
    %v509 = vunpack.c.l.b16 %v230
    %v510 = vunpack.c.h.b16 %v230
    %v511 = vunpack.c.l.b16 %v231
    %v512 = vunpack.c.h.b16 %v231
    %v513 = vunpack.c.l.b16 %v232
    %v514 = vunpack.c.h.b16 %v232
    %v515 = vunpack.c.l.b16 %v233
    %v516 = vunpack.c.h.b16 %v233
    %v517 = vunpack.c.l.b16 %v234
    %v518 = vunpack.c.h.b16 %v234
    %v519 = vunpack.c.l.b16 %v235
    %v520 = vunpack.c.h.b16 %v235
    %v521 = vunpack.c.l.b16 %v236
    %v522 = vunpack.c.h.b16 %v236
    %v523 = vunpack.c.l.b16 %v237
    %v524 = vunpack.c.h.b16 %v237
    %v525 = vunpack.c.l.b16 %v238
    %v526 = vunpack.c.h.b16 %v238
    %v527 = vunpack.c.l.b16 %v239
    %v528 = vunpack.c.h.b16 %v239
    %v529 = vunpack.c.l.b16 %v240
    %v530 = vunpack.c.h.b16 %v240
    %v531 = vunpack.c.l.b16 %v241
    %v532 = vunpack.c.h.b16 %v241
    %v533 = vunpack.c.l.b16 %v242
    %v534 = vunpack.c.h.b16 %v242
    %v535 = vunpack.c.l.b16 %v243
    %v536 = vunpack.c.h.b16 %v243
    %v537 = vunpack.c.l.b16 %v244
    %v538 = vunpack.c.h.b16 %v244
    %v539 = vunpack.c.l.b16 %v245
    %v540 = vunpack.c.h.b16 %v245
    %v541 = vunpack.c.l.b16 %v246
    %v542 = vunpack.c.h.b16 %v246
    %v543 = vunpack.c.l.b16 %v247
    %v544 = vunpack.c.h.b16 %v247
    %v545 = vunpack.c.l.b16 %v248
    %v546 = vunpack.c.h.b16 %v248
    %v547 = vunpack.c.l.b16 %v249
    %v548 = vunpack.c.h.b16 %v249
    %v549 = vunpack.c.l.b16 %v250
    %v550 = vunpack.c.h.b16 %v250
    %v551 = vunpack.c.l.b16 %v251
    %v552 = vunpack.c.h.b16 %v251
    %v553 = vunpack.c.l.b16 %v252
    %v554 = vunpack.c.h.b16 %v252
    %v555 = vunpack.c.l.b16 %v253
    %v556 = vunpack.c.h.b16 %v253
    %v557 = vunpack.c.l.b16 %v254
    %v558 = vunpack.c.h.b16 %v254
    %v559 = vunpack.c.l.b16 %v255
    %v560 = vunpack.c.h.b16 %v255
    %v561 = vunpack.c.l.b16 %v256
    %v562 = vunpack.c.h.b16 %v256
    %v563 = vunpack.c.l.b16 %v257
    %v564 = vunpack.c.h.b16 %v257
    %v565 = vunpack.c.l.b16 %v258
    %v566 = vunpack.c.h.b16 %v258
    %v567 = vunpack.c.l.b16 %v259
    %v568 = vunpack.c.h.b16 %v259
    %v569 = vunpack.c.l.b16 %v260
    %v570 = vunpack.c.h.b16 %v260
    %v571 = vunpack.c.l.b16 %v261
    %v572 = vunpack.c.h.b16 %v261
    %v573 = vunpack.c.l.b16 %v262
    %v574 = vunpack.c.h.b16 %v262
    %v575 = vunpack.c.l.b16 %v263
    %v576 = vunpack.c.h.b16 %v263
    %v577 = vunpack.c.l.b16 %v264
    %v578 = vunpack.c.h.b16 %v264
    %v579 = vunpack.c.l.b16 %v265
    %v580 = vunpack.c.h.b16 %v265
    %v581 = vunpack.c.l.b16 %v266
    %v582 = vunpack.c.h.b16 %v266
    %v583 = vunpack.c.l.b16 %v267
    %v584 = vunpack.c.h.b16 %v267
    %v585 = vunpack.c.l.b16 %v268
    %v586 = vunpack.c.h.b16 %v268
    %v587 = vunpack.c.l.b16 %v269
    %v588 = vunpack.c.h.b16 %v269
    %v589 = vunpack.c.l.b16 %v270
    %v590 = vunpack.c.h.b16 %v270
    %v591 = vunpack.c.l.b16 %v271
    %v592 = vunpack.c.h.b16 %v271
    %v593 = vunpack.c.l.b16 %v272
    %v594 = vunpack.c.h.b16 %v272
    %v595 = vunpack.c.l.b16 %v273
    %v596 = vunpack.c.h.b16 %v273
    %v597 = vunpack.c.l.b16 %v274
    %v598 = vunpack.c.h.b16 %v274
    %v599 = vunpack.c.l.b16 %v275
    %v600 = vunpack.c.h.b16 %v275
    %v601 = vunpack.c.l.b16 %v276
    %v602 = vunpack.c.h.b16 %v276
    %v603 = vunpack.c.l.b16 %v277
    %v604 = vunpack.c.h.b16 %v277
    %v605 = vunpack.c.l.b16 %v278
    %v606 = vunpack.c.h.b16 %v278
    %v607 = vunpack.c.l.b16 %v279
    %v608 = vunpack.c.h.b16 %v279
    %v609 = vunpack.c.l.b16 %v280
    %v610 = vunpack.c.h.b16 %v280
    %v611 = vunpack.c.l.b16 %v281
    %v612 = vunpack.c.h.b16 %v281
    %v613 = vunpack.c.l.b16 %v282
    %v614 = vunpack.c.h.b16 %v282
    %v615 = vunpack.c.l.b16 %v283
    %v616 = vunpack.c.h.b16 %v283
    %v617 = vunpack.c.l.b16 %v284
    %v618 = vunpack.c.h.b16 %v284
    %v619 = vunpack.c.l.b16 %v285
    %v620 = vunpack.c.h.b16 %v285
    %v621 = vunpack.c.l.b16 %v286
    %v622 = vunpack.c.h.b16 %v286
    %v623 = vunpack.c.l.b16 %v287
    %v624 = vunpack.c.h.b16 %v287
    %v625 = vunpack.c.l.b16 %v288
    %v626 = vunpack.c.h.b16 %v288
    %v627 = vunpack.c.l.b16 %v289
    %v628 = vunpack.c.h.b16 %v289
    %v629 = vunpack.c.l.b16 %v290
    %v630 = vunpack.c.h.b16 %v290
    %v631 = vunpack.c.l.b16 %v291
    %v632 = vunpack.c.h.b16 %v291
    %v633 = vunpack.c.l.b16 %v292
    %v634 = vunpack.c.h.b16 %v292
    %v635 = vunpack.c.l.b16 %v293
    %v636 = vunpack.c.h.b16 %v293
    %v637 = vunpack.c.l.b16 %v294
    %v638 = vunpack.c.h.b16 %v294
    %v639 = vunpack.c.l.b16 %v295
    %v640 = vunpack.c.h.b16 %v295
    %v641 = vunpack.c.l.b16 %v296
    %v642 = vunpack.c.h.b16 %v296
    %v643 = vunpack.c.l.b16 %v297
    %v644 = vunpack.c.h.b16 %v297
    %v645 = vunpack.c.l.b16 %v298
    %v646 = vunpack.c.h.b16 %v298
    %v647 = vunpack.c.l.b16 %v299
    %v648 = vunpack.c.h.b16 %v299
    %v649 = vunpack.c.l.b16 %v300
    %v650 = vunpack.c.h.b16 %v300
    %v651 = vunpack.c.l.b16 %v301
    %v652 = vunpack.c.h.b16 %v301
    %v653 = vunpack.c.l.b16 %v302
    %v654 = vunpack.c.h.b16 %v302
    %v655 = vunpack.c.l.b16 %v303
    %v656 = vunpack.c.h.b16 %v303
    %v657 = vunpack.c.l.b16 %v304
    %v658 = vunpack.c.h.b16 %v304
    %v659 = vunpack.c.l.b16 %v305
    %v660 = vunpack.c.h.b16 %v305
    %v661 = vunpack.c.l.b16 %v306
    %v662 = vunpack.c.h.b16 %v306
    %v663 = vunpack.c.l.b16 %v307
    %v664 = vunpack.c.h.b16 %v307
    %v665 = vunpack.c.l.b16 %v308
    %v666 = vunpack.c.h.b16 %v308
    %v667 = vunpack.c.l.b16 %v309
    %v668 = vunpack.c.h.b16 %v309
    %v669 = vunpack.c.l.b16 %v310
    %v670 = vunpack.c.h.b16 %v310
    %v671 = vunpack.c.l.b16 %v311
    %v672 = vunpack.c.h.b16 %v311
    %v673 = vunpack.c.l.b16 %v312
    %v674 = vunpack.c.h.b16 %v312
    %v675 = vunpack.c.l.b16 %v313
    %v676 = vunpack.c.h.b16 %v313
    %v677 = vunpack.c.l.b16 %v314
    %v678 = vunpack.c.h.b16 %v314
    %v679 = vunpack.c.l.b16 %v315
    %v680 = vunpack.c.h.b16 %v315
    %v681 = vunpack.c.l.b16 %v316
    %v682 = vunpack.c.h.b16 %v316
    %v683 = vunpack.c.l.b16 %v317
    %v684 = vunpack.c.h.b16 %v317
    %v685 = vunpack.c.l.b16 %v318
    %v686 = vunpack.c.h.b16 %v318
    %v687 = vunpack.c.l.b16 %v319
    %v688 = vunpack.c.h.b16 %v319
    %v689 = vunpack.c.l.b16 %v320
    %v690 = vunpack.c.h.b16 %v320
    %v691 = vunpack.c.l.b16 %v321
    %v692 = vunpack.c.h.b16 %v321
    %v693 = vunpack.c.l.b16 %v322
    %v694 = vunpack.c.h.b16 %v322
    %v695 = vunpack.c.l.b16 %v323
    %v696 = vunpack.c.h.b16 %v323
    %v697 = vunpack.c.l.b16 %v324
    %v698 = vunpack.c.h.b16 %v324
    %v699 = vunpack.c.l.b16 %v325
    %v700 = vunpack.c.h.b16 %v325
    %v701 = vunpack.c.l.b16 %v326
    %v702 = vunpack.c.h.b16 %v326
    %v703 = vunpack.c.l.b16 %v327
    %v704 = vunpack.c.h.b16 %v327
    %v705 = vunpack.c.l.b16 %v328
    %v706 = vunpack.c.h.b16 %v328
    %v707 = vunpack.c.l.b16 %v329
    %v708 = vunpack.c.h.b16 %v329
    %v709 = vunpack.c.l.b16 %v330
    %v710 = vunpack.c.h.b16 %v330
    %v711 = vunpack.c.l.b16 %v331
    %v712 = vunpack.c.h.b16 %v331
    %v713 = vunpack.c.l.b16 %v332
    %v714 = vunpack.c.h.b16 %v332
    %v715 = vunpack.c.l.b16 %v333
    %v716 = vunpack.c.h.b16 %v333
    %v717 = vunpack.c.l.b16 %v334
    %v718 = vunpack.c.h.b16 %v334
    %v719 = vunpack.c.l.b16 %v335
    %v720 = vunpack.c.h.b16 %v335
    %v721 = vunpack.c.l.b16 %v336
    %v722 = vunpack.c.h.b16 %v336
    %v723 = vunpack.c.l.b16 %v337
    %v724 = vunpack.c.h.b16 %v337
    %v725 = vunpack.c.l.b16 %v338
    %v726 = vunpack.c.h.b16 %v338
    %v727 = vunpack.c.l.b16 %v339
    %v728 = vunpack.c.h.b16 %v339
    %v729 = vunpack.c.l.b16 %v340
    %v730 = vunpack.c.h.b16 %v340
    %v731 = vunpack.c.l.b16 %v341
    %v732 = vunpack.c.h.b16 %v341
    %v733 = vunpack.c.l.b16 %v342
    %v734 = vunpack.c.h.b16 %v342
    %v735 = vunpack.c.l.b16 %v343
    %v736 = vunpack.c.h.b16 %v343
    %v737 = vunpack.c.l.b16 %v344
    %v738 = vunpack.c.h.b16 %v344
    %v739 = vunpack.c.l.b16 %v345
    %v740 = vunpack.c.h.b16 %v345
    %v741 = vunpack.c.l.b16 %v346
    %v742 = vunpack.c.h.b16 %v346
    %v743 = vunpack.c.l.b16 %v347
    %v744 = vunpack.c.h.b16 %v347
    %v745 = vunpack.c.l.b16 %v348
    %v746 = vunpack.c.h.b16 %v348
    %v747 = vunpack.c.l.b16 %v349
    %v748 = vunpack.c.h.b16 %v349
    %v749 = vunpack.c.l.b16 %v350
    %v750 = vunpack.c.h.b16 %v350
    %v751 = vunpack.c.l.b16 %v351
    %v752 = vunpack.c.h.b16 %v351
    %v753 = vunpack.c.l.b16 %v352
    %v754 = vunpack.c.h.b16 %v352
    %v755 = vunpack.c.l.b16 %v353
    %v756 = vunpack.c.h.b16 %v353
    %v757 = vunpack.c.l.b16 %v354
    %v758 = vunpack.c.h.b16 %v354
    %v759 = vunpack.c.l.b16 %v355
    %v760 = vunpack.c.h.b16 %v355
    %v761 = vunpack.c.l.b16 %v356
    %v762 = vunpack.c.h.b16 %v356
    %v763 = vpack.c.b16 %v511, %v507
    %v764 = vpack.c.b16 %v512, %v508
    %v765 = vpack.c.b16 %v513, %v509
    %v766 = vpack.c.b16 %v514, %v510
    %v767 = vpack.c.b16 %v519, %v515
    %v768 = vpack.c.b16 %v520, %v516
    %v769 = vpack.c.b16 %v521, %v517
    %v770 = vpack.c.b16 %v522, %v518
    %v771 = vpack.c.b16 %v527, %v523
    %v772 = vpack.c.b16 %v528, %v524
    %v773 = vpack.c.b16 %v529, %v525
    %v774 = vpack.c.b16 %v530, %v526
    %v775 = vpack.c.b16 %v535, %v531
    %v776 = vpack.c.b16 %v536, %v532
    %v777 = vpack.c.b16 %v537, %v533
    %v778 = vpack.c.b16 %v538, %v534
    %v779 = vpack.c.b16 %v543, %v539
    %v780 = vpack.c.b16 %v544, %v540
    %v781 = vpack.c.b16 %v545, %v541
    %v782 = vpack.c.b16 %v546, %v542
    %v783 = vpack.c.b16 %v551, %v547
    %v784 = vpack.c.b16 %v552, %v548
    %v785 = vpack.c.b16 %v553, %v549
    %v786 = vpack.c.b16 %v554, %v550
    %v787 = vpack.c.b16 %v559, %v555
    %v788 = vpack.c.b16 %v560, %v556
    %v789 = vpack.c.b16 %v561, %v557
    %v790 = vpack.c.b16 %v562, %v558
    %v791 = vpack.c.b16 %v567, %v563
    %v792 = vpack.c.b16 %v568, %v564
    %v793 = vpack.c.b16 %v569, %v565
    %v794 = vpack.c.b16 %v570, %v566
    %v795 = vpack.c.b16 %v575, %v571
    %v796 = vpack.c.b16 %v576, %v572
    %v797 = vpack.c.b16 %v577, %v573
    %v798 = vpack.c.b16 %v578, %v574
    %v799 = vpack.c.b16 %v583, %v579
    %v800 = vpack.c.b16 %v584, %v580
    %v801 = vpack.c.b16 %v585, %v581
    %v802 = vpack.c.b16 %v586, %v582
    %v803 = vpack.c.b16 %v591, %v587
    %v804 = vpack.c.b16 %v592, %v588
    %v805 = vpack.c.b16 %v593, %v589
    %v806 = vpack.c.b16 %v594, %v590
    %v807 = vpack.c.b16 %v599, %v595
    %v808 = vpack.c.b16 %v600, %v596
    %v809 = vpack.c.b16 %v601, %v597
    %v810 = vpack.c.b16 %v602, %v598
    %v811 = vpack.c.b16 %v607, %v603
    %v812 = vpack.c.b16 %v608, %v604
    %v813 = vpack.c.b16 %v609, %v605
    %v814 = vpack.c.b16 %v610, %v606
    %v815 = vpack.c.b16 %v615, %v611
    %v816 = vpack.c.b16 %v616, %v612
    %v817 = vpack.c.b16 %v617, %v613
    %v818 = vpack.c.b16 %v618, %v614
    %v819 = vpack.c.b16 %v623, %v619
    %v820 = vpack.c.b16 %v624, %v620
    %v821 = vpack.c.b16 %v625, %v621
    %v822 = vpack.c.b16 %v626, %v622
    %v823 = vpack.c.b16 %v631, %v627
    %v824 = vpack.c.b16 %v632, %v628
    %v825 = vpack.c.b16 %v633, %v629
    %v826 = vpack.c.b16 %v634, %v630
    %v827 = vpack.c.b16 %v639, %v635
    %v828 = vpack.c.b16 %v640, %v636
    %v829 = vpack.c.b16 %v641, %v637
    %v830 = vpack.c.b16 %v642, %v638
    %v831 = vpack.c.b16 %v647, %v643
    %v832 = vpack.c.b16 %v648, %v644
    %v833 = vpack.c.b16 %v649, %v645
    %v834 = vpack.c.b16 %v650, %v646
    %v835 = vpack.c.b16 %v655, %v651
    %v836 = vpack.c.b16 %v656, %v652
    %v837 = vpack.c.b16 %v657, %v653
    %v838 = vpack.c.b16 %v658, %v654
    %v839 = vpack.c.b16 %v663, %v659
    %v840 = vpack.c.b16 %v664, %v660
    %v841 = vpack.c.b16 %v665, %v661
    %v842 = vpack.c.b16 %v666, %v662
    %v843 = vpack.c.b16 %v671, %v667
    %v844 = vpack.c.b16 %v672, %v668
    %v845 = vpack.c.b16 %v673, %v669
    %v846 = vpack.c.b16 %v674, %v670
    %v847 = vpack.c.b16 %v679, %v675
    %v848 = vpack.c.b16 %v680, %v676
    %v849 = vpack.c.b16 %v681, %v677
    %v850 = vpack.c.b16 %v682, %v678
    %v851 = vpack.c.b16 %v687, %v683
    %v852 = vpack.c.b16 %v688, %v684
    %v853 = vpack.c.b16 %v689, %v685
    %v854 = vpack.c.b16 %v690, %v686
    %v855 = vpack.c.b16 %v695, %v691
    %v856 = vpack.c.b16 %v696, %v692
    %v857 = vpack.c.b16 %v697, %v693
    %v858 = vpack.c.b16 %v698, %v694
    %v859 = vpack.c.b16 %v703, %v699
    %v860 = vpack.c.b16 %v704, %v700
    %v861 = vpack.c.b16 %v705, %v701
    %v862 = vpack.c.b16 %v706, %v702
    %v863 = vpack.c.b16 %v711, %v707
    %v864 = vpack.c.b16 %v712, %v708
    %v865 = vpack.c.b16 %v713, %v709
    %v866 = vpack.c.b16 %v714, %v710
    %v867 = vpack.c.b16 %v719, %v715
    %v868 = vpack.c.b16 %v720, %v716
    %v869 = vpack.c.b16 %v721, %v717
    %v870 = vpack.c.b16 %v722, %v718
    %v871 = vpack.c.b16 %v727, %v723
    %v872 = vpack.c.b16 %v728, %v724
    %v873 = vpack.c.b16 %v729, %v725
    %v874 = vpack.c.b16 %v730, %v726
    %v875 = vpack.c.b16 %v735, %v731
    %v876 = vpack.c.b16 %v736, %v732
    %v877 = vpack.c.b16 %v737, %v733
    %v878 = vpack.c.b16 %v738, %v734
    %v879 = vpack.c.b16 %v743, %v739
    %v880 = vpack.c.b16 %v744, %v740
    %v881 = vpack.c.b16 %v745, %v741
    %v882 = vpack.c.b16 %v746, %v742
    %v883 = vpack.c.b16 %v751, %v747
    %v884 = vpack.c.b16 %v752, %v748
    %v885 = vpack.c.b16 %v753, %v749
    %v886 = vpack.c.b16 %v754, %v750
    %v887 = vpack.c.b16 %v759, %v755
    %v888 = vpack.c.b16 %v760, %v756
    %v889 = vpack.c.b16 %v761, %v757
    %v890 = vpack.c.b16 %v762, %v758
    %1019 = vmatprep.subr.bf16.mxu0 %v764
    %1020 = vmatpush1.bf16.msra.mxu0 %v763
    %1021 = vmatprep.subr.bf16.mxu0 %v768
    %1022 = vmatpush1.bf16.msra.mxu0 %v767
    %1023 = vmatprep.subr.bf16.mxu0 %v772
    %1024 = vmatpush1.bf16.msra.mxu0 %v771
    %1025 = vmatprep.subr.bf16.mxu0 %v776
    %1026 = vmatpush1.bf16.msra.mxu0 %v775
    %1027 = vmatprep.subr.bf16.mxu0 %v780
    %1028 = vmatpush1.bf16.msra.mxu0 %v779
    %1029 = vmatprep.subr.bf16.mxu0 %v784
    %1030 = vmatpush1.bf16.msra.mxu0 %v783
    %1031 = vmatprep.subr.bf16.mxu0 %v788
    %1032 = vmatpush1.bf16.msra.mxu0 %v787
    %1033 = vmatprep.subr.bf16.mxu0 %v792
    %1034 = vmatpush1.bf16.msra.mxu0 %v791
    %1035 = vmatprep.subr.bf16.mxu0 %v796
    %1036 = vmatpush1.bf16.msra.mxu0 %v795
    %1037 = vmatprep.subr.bf16.mxu0 %v800
    %1038 = vmatpush1.bf16.msra.mxu0 %v799
    %1039 = vmatprep.subr.bf16.mxu0 %v804
    %1040 = vmatpush1.bf16.msra.mxu0 %v803
    %1041 = vmatprep.subr.bf16.mxu0 %v808
    %1042 = vmatpush1.bf16.msra.mxu0 %v807
    %1043 = vmatprep.subr.bf16.mxu0 %v812
    %1044 = vmatpush1.bf16.msra.mxu0 %v811
    %1045 = vmatprep.subr.bf16.mxu0 %v816
    %1046 = vmatpush1.bf16.msra.mxu0 %v815
    %1047 = vmatprep.subr.bf16.mxu0 %v820
    %1048 = vmatpush1.bf16.msra.mxu0 %v819
    %1049 = vmatprep.subr.bf16.mxu0 %v824
    %1050 = vmatpush1.bf16.msra.mxu0 %v823
    %1051 = vmatprep.mubr.bf16.mxu0 %v226
    %1052 = vmatmul.mubr.bf16.gmra.mrb[0].mxu0 %v225
    %v1053 = vpop.f32.mrb[0].mxu0
    %v1054 = vadd.f32 %v362, %v1053
    %v1055 = vpop.f32.mrb[0].mxu0
    %v1056 = vadd.f32 %v366, %v1055
    %v1057 = vpop.f32.mrb[0].mxu0
    %v1058 = vadd.f32 %v362, %v1057
    %v1059 = vpop.f32.mrb[0].mxu0
    %v1060 = vadd.f32 %v366, %v1059
    %1061 = vdwg.mxu0
    %1062 = vmatprep.subr.bf16.mxu0 %v828
    %1063 = vmatpush1.bf16.msra.mxu0 %v827
    %1064 = vmatprep.subr.bf16.mxu0 %v832
    %1065 = vmatpush1.bf16.msra.mxu0 %v831
    %1066 = vmatprep.subr.bf16.mxu0 %v836
    %1067 = vmatpush1.bf16.msra.mxu0 %v835
    %1068 = vmatprep.subr.bf16.mxu0 %v840
    %1069 = vmatpush1.bf16.msra.mxu0 %v839
    %1070 = vmatprep.subr.bf16.mxu0 %v844
    %1071 = vmatpush1.bf16.msra.mxu0 %v843
    %1072 = vmatprep.subr.bf16.mxu0 %v848
    %1073 = vmatpush1.bf16.msra.mxu0 %v847
    %1074 = vmatprep.subr.bf16.mxu0 %v852
    %1075 = vmatpush1.bf16.msra.mxu0 %v851
    %1076 = vmatprep.subr.bf16.mxu0 %v856
    %1077 = vmatpush1.bf16.msra.mxu0 %v855
    %1078 = vmatprep.subr.bf16.mxu0 %v860
    %1079 = vmatpush1.bf16.msra.mxu0 %v859
    %1080 = vmatprep.subr.bf16.mxu0 %v864
    %1081 = vmatpush1.bf16.msra.mxu0 %v863
    %1082 = vmatprep.subr.bf16.mxu0 %v868
    %1083 = vmatpush1.bf16.msra.mxu0 %v867
    %1084 = vmatprep.subr.bf16.mxu0 %v872
    %1085 = vmatpush1.bf16.msra.mxu0 %v871
    %1086 = vmatprep.subr.bf16.mxu0 %v876
    %1087 = vmatpush1.bf16.msra.mxu0 %v875
    %1088 = vmatprep.subr.bf16.mxu0 %v880
    %1089 = vmatpush1.bf16.msra.mxu0 %v879
    %1090 = vmatprep.subr.bf16.mxu0 %v884
    %1091 = vmatpush1.bf16.msra.mxu0 %v883
    %1092 = vmatprep.subr.bf16.mxu0 %v888
    %1093 = vmatpush1.bf16.msra.mxu0 %v887
    %1094 = vmatprep.mubr.bf16.mxu0 %v228
    %1095 = vmatmul.mubr.bf16.gmra.mrb[0].mxu0 %v227
    %v1096 = vpop.f32.mrb[0].mxu0
    %v1097 = vadd.f32 %v1054, %v1096
    %v1098 = vpop.f32.mrb[0].mxu0
    %v1099 = vadd.f32 %v1056, %v1098
    %v1100 = vpop.f32.mrb[0].mxu0
    %v1101 = vadd.f32 %v1058, %v1100
    %v1102 = vpop.f32.mrb[0].mxu0
    %v1103 = vadd.f32 %v1060, %v1102
    %1104 = vdwg.mxu0
    %1105 = vmatprep.subr.bf16.mxu0 %v766
    %1106 = vmatpush1.bf16.msra.mxu0 %v765
    %1107 = vmatprep.subr.bf16.mxu0 %v770
    %1108 = vmatpush1.bf16.msra.mxu0 %v769
    %1109 = vmatprep.subr.bf16.mxu0 %v774
    %1110 = vmatpush1.bf16.msra.mxu0 %v773
    %1111 = vmatprep.subr.bf16.mxu0 %v778
    %1112 = vmatpush1.bf16.msra.mxu0 %v777
    %1113 = vmatprep.subr.bf16.mxu0 %v782
    %1114 = vmatpush1.bf16.msra.mxu0 %v781
    %1115 = vmatprep.subr.bf16.mxu0 %v786
    %1116 = vmatpush1.bf16.msra.mxu0 %v785
    %1117 = vmatprep.subr.bf16.mxu0 %v790
    %1118 = vmatpush1.bf16.msra.mxu0 %v789
    %1119 = vmatprep.subr.bf16.mxu0 %v794
    %1120 = vmatpush1.bf16.msra.mxu0 %v793
    %1121 = vmatprep.subr.bf16.mxu0 %v798
    %1122 = vmatpush1.bf16.msra.mxu0 %v797
    %1123 = vmatprep.subr.bf16.mxu0 %v802
    %1124 = vmatpush1.bf16.msra.mxu0 %v801
    %1125 = vmatprep.subr.bf16.mxu0 %v806
    %1126 = vmatpush1.bf16.msra.mxu0 %v805
    %1127 = vmatprep.subr.bf16.mxu0 %v810
    %1128 = vmatpush1.bf16.msra.mxu0 %v809
    %1129 = vmatprep.subr.bf16.mxu0 %v814
    %1130 = vmatpush1.bf16.msra.mxu0 %v813
    %1131 = vmatprep.subr.bf16.mxu0 %v818
    %1132 = vmatpush1.bf16.msra.mxu0 %v817
    %1133 = vmatprep.subr.bf16.mxu0 %v822
    %1134 = vmatpush1.bf16.msra.mxu0 %v821
    %1135 = vmatprep.subr.bf16.mxu0 %v826
    %1136 = vmatpush1.bf16.msra.mxu0 %v825
    %1137 = vmatprep.mubr.bf16.mxu0 %v226
    %1138 = vmatmul.mubr.bf16.gmra.mrb[0].mxu0 %v225
    %v1139 = vpop.f32.mrb[0].mxu0
    %v1140 = vadd.f32 %v370, %v1139
    %v1141 = vpop.f32.mrb[0].mxu0
    %v1142 = vadd.f32 %v374, %v1141
    %v1143 = vpop.f32.mrb[0].mxu0
    %v1144 = vadd.f32 %v370, %v1143
    %v1145 = vpop.f32.mrb[0].mxu0
    %v1146 = vadd.f32 %v374, %v1145
    %1147 = vdwg.mxu0
    %1148 = vmatprep.subr.bf16.mxu0 %v830
    %1149 = vmatpush1.bf16.msra.mxu0 %v829
    %1150 = vmatprep.subr.bf16.mxu0 %v834
    %1151 = vmatpush1.bf16.msra.mxu0 %v833
    %1152 = vmatprep.subr.bf16.mxu0 %v838
    %1153 = vmatpush1.bf16.msra.mxu0 %v837
    %1154 = vmatprep.subr.bf16.mxu0 %v842
    %1155 = vmatpush1.bf16.msra.mxu0 %v841
    %1156 = vmatprep.subr.bf16.mxu0 %v846
    %1157 = vmatpush1.bf16.msra.mxu0 %v845
    %1158 = vmatprep.subr.bf16.mxu0 %v850
    %1159 = vmatpush1.bf16.msra.mxu0 %v849
    %1160 = vmatprep.subr.bf16.mxu0 %v854
    %1161 = vmatpush1.bf16.msra.mxu0 %v853
    %1162 = vmatprep.subr.bf16.mxu0 %v858
    %1163 = vmatpush1.bf16.msra.mxu0 %v857
    %1164 = vmatprep.subr.bf16.mxu0 %v862
    %1165 = vmatpush1.bf16.msra.mxu0 %v861
    %1166 = vmatprep.subr.bf16.mxu0 %v866
    %1167 = vmatpush1.bf16.msra.mxu0 %v865
    %1168 = vmatprep.subr.bf16.mxu0 %v870
    %1169 = vmatpush1.bf16.msra.mxu0 %v869
    %1170 = vmatprep.subr.bf16.mxu0 %v874
    %1171 = vmatpush1.bf16.msra.mxu0 %v873
    %1172 = vmatprep.subr.bf16.mxu0 %v878
    %1173 = vmatpush1.bf16.msra.mxu0 %v877
    %1174 = vmatprep.subr.bf16.mxu0 %v882
    %1175 = vmatpush1.bf16.msra.mxu0 %v881
    %1176 = vmatprep.subr.bf16.mxu0 %v886
    %1177 = vmatpush1.bf16.msra.mxu0 %v885
    %1178 = vmatprep.subr.bf16.mxu0 %v890
    %1179 = vmatpush1.bf16.msra.mxu0 %v889
    %1180 = vmatprep.mubr.bf16.mxu0 %v228
    %1181 = vmatmul.mubr.bf16.gmra.mrb[0].mxu0 %v227
    %v1182 = vpop.f32.mrb[0].mxu0
    %v1183 = vadd.f32 %v1140, %v1182
    %v1184 = vpop.f32.mrb[0].mxu0
    %v1185 = vadd.f32 %v1142, %v1184
    %v1186 = vpop.f32.mrb[0].mxu0
    %v1187 = vadd.f32 %v1144, %v1186
    %v1188 = vpop.f32.mrb[0].mxu0
    %v1189 = vadd.f32 %v1146, %v1188
    %1190 = vdwg.mxu0
    %v1191 = vmax.f32 %v1097, 0.0
    %v1192 = vmax.f32 %v1099, 0.0
    %v1193 = vmax.f32 %v1183, 0.0
    %v1194 = vmax.f32 %v1185, 0.0
    %v1195 = vmax.f32 %v1101, 0.0
    %v1196 = vmax.f32 %v1103, 0.0
    %v1197 = vmax.f32 %v1187, 0.0
    %v1198 = vmax.f32 %v1189, 0.0
    %v1199 = vpack.c.bf16 %v1195, %v1191
    %v1200 = vpack.c.bf16 %v1196, %v1192
    %v1201 = vpack.c.bf16 %v1197, %v1193
    %v1202 = vpack.c.bf16 %v1198, %v1194
    %v1203 = vld [vmem:[#allocation4] sm:$0xff]
    %v1204 = vld [vmem:[#allocation4 + $0x8] sm:$0xff]
    %v1205 = vld [vmem:[#allocation4 + $0x10] sm:$0xff]
    %v1206 = vld [vmem:[#allocation4 + $0x18] sm:$0xff]
    %v1207 = vld [vmem:[#allocation4 + $0x20] sm:$0xff]
    %v1208 = vld [vmem:[#allocation4 + $0x28] sm:$0xff]
    %v1209 = vld [vmem:[#allocation4 + $0x30] sm:$0xff]
    %v1210 = vld [vmem:[#allocation4 + $0x38] sm:$0xff]
    %v1211 = vld [vmem:[#allocation4 + $0x40] sm:$0xff]
    %v1212 = vld [vmem:[#allocation4 + $0x48] sm:$0xff]
    %v1213 = vld [vmem:[#allocation4 + $0x50] sm:$0xff]
    %v1214 = vld [vmem:[#allocation4 + $0x58] sm:$0xff]
    %v1215 = vld [vmem:[#allocation4 + $0x60] sm:$0xff]
    %v1216 = vld [vmem:[#allocation4 + $0x68] sm:$0xff]
    %v1217 = vld [vmem:[#allocation4 + $0x70] sm:$0xff]
    %v1218 = vld [vmem:[#allocation4 + $0x78] sm:$0xff]
    %v1219 = vld [vmem:[#allocation4 + $0x80] sm:$0xff]
    %v1220 = vld [vmem:[#allocation4 + $0x88] sm:$0xff]
    %v1221 = vld [vmem:[#allocation4 + $0x90] sm:$0xff]
    %v1222 = vld [vmem:[#allocation4 + $0x98] sm:$0xff]
    %v1223 = vld [vmem:[#allocation4 + $0xa0] sm:$0xff]
    %v1224 = vld [vmem:[#allocation4 + $0xa8] sm:$0xff]
    %v1225 = vld [vmem:[#allocation4 + $0xb0] sm:$0xff]
    %v1226 = vld [vmem:[#allocation4 + $0xb8] sm:$0xff]
    %v1227 = vld [vmem:[#allocation4 + $0xc0] sm:$0xff]
    %v1228 = vld [vmem:[#allocation4 + $0xc8] sm:$0xff]
    %v1229 = vld [vmem:[#allocation4 + $0xd0] sm:$0xff]
    %v1230 = vld [vmem:[#allocation4 + $0xd8] sm:$0xff]
    %v1231 = vld [vmem:[#allocation4 + $0xe0] sm:$0xff]
    %v1232 = vld [vmem:[#allocation4 + $0xe8] sm:$0xff]
    %v1233 = vld [vmem:[#allocation4 + $0xf0] sm:$0xff]
    %v1234 = vld [vmem:[#allocation4 + $0xf8] sm:$0xff]
    %v1235 = vld [vmem:[#allocation4 + $0x100] sm:$0xff]
    %v1236 = vld [vmem:[#allocation4 + $0x108] sm:$0xff]
    %v1237 = vld [vmem:[#allocation4 + $0x110] sm:$0xff]
    %v1238 = vld [vmem:[#allocation4 + $0x118] sm:$0xff]
    %v1239 = vld [vmem:[#allocation4 + $0x120] sm:$0xff]
    %v1240 = vld [vmem:[#allocation4 + $0x128] sm:$0xff]
    %v1241 = vld [vmem:[#allocation4 + $0x130] sm:$0xff]
    %v1242 = vld [vmem:[#allocation4 + $0x138] sm:$0xff]
    %v1243 = vld [vmem:[#allocation4 + $0x140] sm:$0xff]
    %v1244 = vld [vmem:[#allocation4 + $0x148] sm:$0xff]
    %v1245 = vld [vmem:[#allocation4 + $0x150] sm:$0xff]
    %v1246 = vld [vmem:[#allocation4 + $0x158] sm:$0xff]
    %v1247 = vld [vmem:[#allocation4 + $0x160] sm:$0xff]
    %v1248 = vld [vmem:[#allocation4 + $0x168] sm:$0xff]
    %v1249 = vld [vmem:[#allocation4 + $0x170] sm:$0xff]
    %v1250 = vld [vmem:[#allocation4 + $0x178] sm:$0xff]
    %v1251 = vld [vmem:[#allocation4 + $0x180] sm:$0xff]
    %v1252 = vld [vmem:[#allocation4 + $0x188] sm:$0xff]
    %v1253 = vld [vmem:[#allocation4 + $0x190] sm:$0xff]
    %v1254 = vld [vmem:[#allocation4 + $0x198] sm:$0xff]
    %v1255 = vld [vmem:[#allocation4 + $0x1a0] sm:$0xff]
    %v1256 = vld [vmem:[#allocation4 + $0x1a8] sm:$0xff]
    %v1257 = vld [vmem:[#allocation4 + $0x1b0] sm:$0xff]
    %v1258 = vld [vmem:[#allocation4 + $0x1b8] sm:$0xff]
    %v1259 = vld [vmem:[#allocation4 + $0x1c0] sm:$0xff]
    %v1260 = vld [vmem:[#allocation4 + $0x1c8] sm:$0xff]
    %v1261 = vld [vmem:[#allocation4 + $0x1d0] sm:$0xff]
    %v1262 = vld [vmem:[#allocation4 + $0x1d8] sm:$0xff]
    %v1263 = vld [vmem:[#allocation4 + $0x1e0] sm:$0xff]
    %v1264 = vld [vmem:[#allocation4 + $0x1e8] sm:$0xff]
    %v1265 = vld [vmem:[#allocation4 + $0x1f0] sm:$0xff]
    %v1266 = vld [vmem:[#allocation4 + $0x1f8] sm:$0xff]
    %v1267 = vld [vmem:[%s6] sm:$0x3]
    %v1269 = vlaneseq
    %v1270 = vshrl.u32 %v1269, 7
    %v1271 = vsub.s32 0, %v1270
    %v1272 = vrot.slane %v1267, %v1271
    %v1273 = vlaneseq
    %v1274 = vshrl.u32 %v1273, 7
    %v1275 = vsub.s32 1, %v1274
    %v1276 = vrot.slane %v1267, %v1275
    %v1343 = vunpack.c.l.b16 %v1203
    %v1344 = vunpack.c.h.b16 %v1203
    %v1345 = vunpack.c.l.b16 %v1204
    %v1346 = vunpack.c.h.b16 %v1204
    %v1347 = vunpack.c.l.b16 %v1205
    %v1348 = vunpack.c.h.b16 %v1205
    %v1349 = vunpack.c.l.b16 %v1206
    %v1350 = vunpack.c.h.b16 %v1206
    %v1351 = vunpack.c.l.b16 %v1207
    %v1352 = vunpack.c.h.b16 %v1207
    %v1353 = vunpack.c.l.b16 %v1208
    %v1354 = vunpack.c.h.b16 %v1208
    %v1355 = vunpack.c.l.b16 %v1209
    %v1356 = vunpack.c.h.b16 %v1209
    %v1357 = vunpack.c.l.b16 %v1210
    %v1358 = vunpack.c.h.b16 %v1210
    %v1359 = vunpack.c.l.b16 %v1211
    %v1360 = vunpack.c.h.b16 %v1211
    %v1361 = vunpack.c.l.b16 %v1212
    %v1362 = vunpack.c.h.b16 %v1212
    %v1363 = vunpack.c.l.b16 %v1213
    %v1364 = vunpack.c.h.b16 %v1213
    %v1365 = vunpack.c.l.b16 %v1214
    %v1366 = vunpack.c.h.b16 %v1214
    %v1367 = vunpack.c.l.b16 %v1215
    %v1368 = vunpack.c.h.b16 %v1215
    %v1369 = vunpack.c.l.b16 %v1216
    %v1370 = vunpack.c.h.b16 %v1216
    %v1371 = vunpack.c.l.b16 %v1217
    %v1372 = vunpack.c.h.b16 %v1217
    %v1373 = vunpack.c.l.b16 %v1218
    %v1374 = vunpack.c.h.b16 %v1218
    %v1375 = vunpack.c.l.b16 %v1219
    %v1376 = vunpack.c.h.b16 %v1219
    %v1377 = vunpack.c.l.b16 %v1220
    %v1378 = vunpack.c.h.b16 %v1220
    %v1379 = vunpack.c.l.b16 %v1221
    %v1380 = vunpack.c.h.b16 %v1221
    %v1381 = vunpack.c.l.b16 %v1222
    %v1382 = vunpack.c.h.b16 %v1222
    %v1383 = vunpack.c.l.b16 %v1223
    %v1384 = vunpack.c.h.b16 %v1223
    %v1385 = vunpack.c.l.b16 %v1224
    %v1386 = vunpack.c.h.b16 %v1224
    %v1387 = vunpack.c.l.b16 %v1225
    %v1388 = vunpack.c.h.b16 %v1225
    %v1389 = vunpack.c.l.b16 %v1226
    %v1390 = vunpack.c.h.b16 %v1226
    %v1391 = vunpack.c.l.b16 %v1227
    %v1392 = vunpack.c.h.b16 %v1227
    %v1393 = vunpack.c.l.b16 %v1228
    %v1394 = vunpack.c.h.b16 %v1228
    %v1395 = vunpack.c.l.b16 %v1229
    %v1396 = vunpack.c.h.b16 %v1229
    %v1397 = vunpack.c.l.b16 %v1230
    %v1398 = vunpack.c.h.b16 %v1230
    %v1399 = vunpack.c.l.b16 %v1231
    %v1400 = vunpack.c.h.b16 %v1231
    %v1401 = vunpack.c.l.b16 %v1232
    %v1402 = vunpack.c.h.b16 %v1232
    %v1403 = vunpack.c.l.b16 %v1233
    %v1404 = vunpack.c.h.b16 %v1233
    %v1405 = vunpack.c.l.b16 %v1234
    %v1406 = vunpack.c.h.b16 %v1234
    %v1407 = vunpack.c.l.b16 %v1235
    %v1408 = vunpack.c.h.b16 %v1235
    %v1409 = vunpack.c.l.b16 %v1236
    %v1410 = vunpack.c.h.b16 %v1236
    %v1411 = vunpack.c.l.b16 %v1237
    %v1412 = vunpack.c.h.b16 %v1237
    %v1413 = vunpack.c.l.b16 %v1238
    %v1414 = vunpack.c.h.b16 %v1238
    %v1415 = vunpack.c.l.b16 %v1239
    %v1416 = vunpack.c.h.b16 %v1239
    %v1417 = vunpack.c.l.b16 %v1240
    %v1418 = vunpack.c.h.b16 %v1240
    %v1419 = vunpack.c.l.b16 %v1241
    %v1420 = vunpack.c.h.b16 %v1241
    %v1421 = vunpack.c.l.b16 %v1242
    %v1422 = vunpack.c.h.b16 %v1242
    %v1423 = vunpack.c.l.b16 %v1243
    %v1424 = vunpack.c.h.b16 %v1243
    %v1425 = vunpack.c.l.b16 %v1244
    %v1426 = vunpack.c.h.b16 %v1244
    %v1427 = vunpack.c.l.b16 %v1245
    %v1428 = vunpack.c.h.b16 %v1245
    %v1429 = vunpack.c.l.b16 %v1246
    %v1430 = vunpack.c.h.b16 %v1246
    %v1431 = vunpack.c.l.b16 %v1247
    %v1432 = vunpack.c.h.b16 %v1247
    %v1433 = vunpack.c.l.b16 %v1248
    %v1434 = vunpack.c.h.b16 %v1248
    %v1435 = vunpack.c.l.b16 %v1249
    %v1436 = vunpack.c.h.b16 %v1249
    %v1437 = vunpack.c.l.b16 %v1250
    %v1438 = vunpack.c.h.b16 %v1250
    %v1439 = vunpack.c.l.b16 %v1251
    %v1440 = vunpack.c.h.b16 %v1251
    %v1441 = vunpack.c.l.b16 %v1252
    %v1442 = vunpack.c.h.b16 %v1252
    %v1443 = vunpack.c.l.b16 %v1253
    %v1444 = vunpack.c.h.b16 %v1253
    %v1445 = vunpack.c.l.b16 %v1254
    %v1446 = vunpack.c.h.b16 %v1254
    %v1447 = vunpack.c.l.b16 %v1255
    %v1448 = vunpack.c.h.b16 %v1255
    %v1449 = vunpack.c.l.b16 %v1256
    %v1450 = vunpack.c.h.b16 %v1256
    %v1451 = vunpack.c.l.b16 %v1257
    %v1452 = vunpack.c.h.b16 %v1257
    %v1453 = vunpack.c.l.b16 %v1258
    %v1454 = vunpack.c.h.b16 %v1258
    %v1455 = vunpack.c.l.b16 %v1259
    %v1456 = vunpack.c.h.b16 %v1259
    %v1457 = vunpack.c.l.b16 %v1260
    %v1458 = vunpack.c.h.b16 %v1260
    %v1459 = vunpack.c.l.b16 %v1261
    %v1460 = vunpack.c.h.b16 %v1261
    %v1461 = vunpack.c.l.b16 %v1262
    %v1462 = vunpack.c.h.b16 %v1262
    %v1463 = vunpack.c.l.b16 %v1263
    %v1464 = vunpack.c.h.b16 %v1263
    %v1465 = vunpack.c.l.b16 %v1264
    %v1466 = vunpack.c.h.b16 %v1264
    %v1467 = vunpack.c.l.b16 %v1265
    %v1468 = vunpack.c.h.b16 %v1265
    %v1469 = vunpack.c.l.b16 %v1266
    %v1470 = vunpack.c.h.b16 %v1266
    %v1471 = vpack.c.b16 %v1345, %v1343
    %v1472 = vpack.c.b16 %v1346, %v1344
    %v1473 = vpack.c.b16 %v1349, %v1347
    %v1474 = vpack.c.b16 %v1350, %v1348
    %v1475 = vpack.c.b16 %v1353, %v1351
    %v1476 = vpack.c.b16 %v1354, %v1352
    %v1477 = vpack.c.b16 %v1357, %v1355
    %v1478 = vpack.c.b16 %v1358, %v1356
    %v1479 = vpack.c.b16 %v1361, %v1359
    %v1480 = vpack.c.b16 %v1362, %v1360
    %v1481 = vpack.c.b16 %v1365, %v1363
    %v1482 = vpack.c.b16 %v1366, %v1364
    %v1483 = vpack.c.b16 %v1369, %v1367
    %v1484 = vpack.c.b16 %v1370, %v1368
    %v1485 = vpack.c.b16 %v1373, %v1371
    %v1486 = vpack.c.b16 %v1374, %v1372
    %v1487 = vpack.c.b16 %v1377, %v1375
    %v1488 = vpack.c.b16 %v1378, %v1376
    %v1489 = vpack.c.b16 %v1381, %v1379
    %v1490 = vpack.c.b16 %v1382, %v1380
    %v1491 = vpack.c.b16 %v1385, %v1383
    %v1492 = vpack.c.b16 %v1386, %v1384
    %v1493 = vpack.c.b16 %v1389, %v1387
    %v1494 = vpack.c.b16 %v1390, %v1388
    %v1495 = vpack.c.b16 %v1393, %v1391
    %v1496 = vpack.c.b16 %v1394, %v1392
    %v1497 = vpack.c.b16 %v1397, %v1395
    %v1498 = vpack.c.b16 %v1398, %v1396
    %v1499 = vpack.c.b16 %v1401, %v1399
    %v1500 = vpack.c.b16 %v1402, %v1400
    %v1501 = vpack.c.b16 %v1405, %v1403
    %v1502 = vpack.c.b16 %v1406, %v1404
    %v1503 = vpack.c.b16 %v1409, %v1407
    %v1504 = vpack.c.b16 %v1410, %v1408
    %v1505 = vpack.c.b16 %v1413, %v1411
    %v1506 = vpack.c.b16 %v1414, %v1412
    %v1507 = vpack.c.b16 %v1417, %v1415
    %v1508 = vpack.c.b16 %v1418, %v1416
    %v1509 = vpack.c.b16 %v1421, %v1419
    %v1510 = vpack.c.b16 %v1422, %v1420
    %v1511 = vpack.c.b16 %v1425, %v1423
    %v1512 = vpack.c.b16 %v1426, %v1424
    %v1513 = vpack.c.b16 %v1429, %v1427
    %v1514 = vpack.c.b16 %v1430, %v1428
    %v1515 = vpack.c.b16 %v1433, %v1431
    %v1516 = vpack.c.b16 %v1434, %v1432
    %v1517 = vpack.c.b16 %v1437, %v1435
    %v1518 = vpack.c.b16 %v1438, %v1436
    %v1519 = vpack.c.b16 %v1441, %v1439
    %v1520 = vpack.c.b16 %v1442, %v1440
    %v1521 = vpack.c.b16 %v1445, %v1443
    %v1522 = vpack.c.b16 %v1446, %v1444
    %v1523 = vpack.c.b16 %v1449, %v1447
    %v1524 = vpack.c.b16 %v1450, %v1448
    %v1525 = vpack.c.b16 %v1453, %v1451
    %v1526 = vpack.c.b16 %v1454, %v1452
    %v1527 = vpack.c.b16 %v1457, %v1455
    %v1528 = vpack.c.b16 %v1458, %v1456
    %v1529 = vpack.c.b16 %v1461, %v1459
    %v1530 = vpack.c.b16 %v1462, %v1460
    %v1531 = vpack.c.b16 %v1465, %v1463
    %v1532 = vpack.c.b16 %v1466, %v1464
    %v1533 = vpack.c.b16 %v1469, %v1467
    %v1534 = vpack.c.b16 %v1470, %v1468
    %1599 = vmatprep.subr.bf16.mxu0 %v1472
    %1600 = vmatpush1.bf16.msra.mxu0 %v1471
    %1601 = vmatprep.subr.bf16.mxu0 %v1474
    %1602 = vmatpush1.bf16.msra.mxu0 %v1473
    %1603 = vmatprep.subr.bf16.mxu0 %v1476
    %1604 = vmatpush1.bf16.msra.mxu0 %v1475
    %1605 = vmatprep.subr.bf16.mxu0 %v1478
    %1606 = vmatpush1.bf16.msra.mxu0 %v1477
    %1607 = vmatprep.subr.bf16.mxu0 %v1480
    %1608 = vmatpush1.bf16.msra.mxu0 %v1479
    %1609 = vmatprep.subr.bf16.mxu0 %v1482
    %1610 = vmatpush1.bf16.msra.mxu0 %v1481
    %1611 = vmatprep.subr.bf16.mxu0 %v1484
    %1612 = vmatpush1.bf16.msra.mxu0 %v1483
    %1613 = vmatprep.subr.bf16.mxu0 %v1486
    %1614 = vmatpush1.bf16.msra.mxu0 %v1485
    %1615 = vmatprep.subr.bf16.mxu0 %v1488
    %1616 = vmatpush1.bf16.msra.mxu0 %v1487
    %1617 = vmatprep.subr.bf16.mxu0 %v1490
    %1618 = vmatpush1.bf16.msra.mxu0 %v1489
    %1619 = vmatprep.subr.bf16.mxu0 %v1492
    %1620 = vmatpush1.bf16.msra.mxu0 %v1491
    %1621 = vmatprep.subr.bf16.mxu0 %v1494
    %1622 = vmatpush1.bf16.msra.mxu0 %v1493
    %1623 = vmatprep.subr.bf16.mxu0 %v1496
    %1624 = vmatpush1.bf16.msra.mxu0 %v1495
    %1625 = vmatprep.subr.bf16.mxu0 %v1498
    %1626 = vmatpush1.bf16.msra.mxu0 %v1497
    %1627 = vmatprep.subr.bf16.mxu0 %v1500
    %1628 = vmatpush1.bf16.msra.mxu0 %v1499
    %1629 = vmatprep.subr.bf16.mxu0 %v1502
    %1630 = vmatpush1.bf16.msra.mxu0 %v1501
    %1631 = vmatprep.mubr.bf16.mxu0 %v1200
    %1632 = vmatmul.mubr.bf16.gmra.mrb[0].mxu0 %v1199
    %v1633 = vpop.f32.mrb[0].mxu0
    %v1634 = vadd.f32 %v1272, %v1633
    %v1635 = vpop.f32.mrb[0].mxu0
    %v1636 = vadd.f32 %v1276, %v1635
    %v1637 = vpop.f32.mrb[0].mxu0
    %v1638 = vadd.f32 %v1272, %v1637
    %v1639 = vpop.f32.mrb[0].mxu0
    %v1640 = vadd.f32 %v1276, %v1639
    %1641 = vdwg.mxu0
    %1642 = vmatprep.subr.bf16.mxu0 %v1504
    %1643 = vmatpush1.bf16.msra.mxu0 %v1503
    %1644 = vmatprep.subr.bf16.mxu0 %v1506
    %1645 = vmatpush1.bf16.msra.mxu0 %v1505
    %1646 = vmatprep.subr.bf16.mxu0 %v1508
    %1647 = vmatpush1.bf16.msra.mxu0 %v1507
    %1648 = vmatprep.subr.bf16.mxu0 %v1510
    %1649 = vmatpush1.bf16.msra.mxu0 %v1509
    %1650 = vmatprep.subr.bf16.mxu0 %v1512
    %1651 = vmatpush1.bf16.msra.mxu0 %v1511
    %1652 = vmatprep.subr.bf16.mxu0 %v1514
    %1653 = vmatpush1.bf16.msra.mxu0 %v1513
    %1654 = vmatprep.subr.bf16.mxu0 %v1516
    %1655 = vmatpush1.bf16.msra.mxu0 %v1515
    %1656 = vmatprep.subr.bf16.mxu0 %v1518
    %1657 = vmatpush1.bf16.msra.mxu0 %v1517
    %1658 = vmatprep.subr.bf16.mxu0 %v1520
    %1659 = vmatpush1.bf16.msra.mxu0 %v1519
    %1660 = vmatprep.subr.bf16.mxu0 %v1522
    %1661 = vmatpush1.bf16.msra.mxu0 %v1521
    %1662 = vmatprep.subr.bf16.mxu0 %v1524
    %1663 = vmatpush1.bf16.msra.mxu0 %v1523
    %1664 = vmatprep.subr.bf16.mxu0 %v1526
    %1665 = vmatpush1.bf16.msra.mxu0 %v1525
    %1666 = vmatprep.subr.bf16.mxu0 %v1528
    %1667 = vmatpush1.bf16.msra.mxu0 %v1527
    %1668 = vmatprep.subr.bf16.mxu0 %v1530
    %1669 = vmatpush1.bf16.msra.mxu0 %v1529
    %1670 = vmatprep.subr.bf16.mxu0 %v1532
    %1671 = vmatpush1.bf16.msra.mxu0 %v1531
    %1672 = vmatprep.subr.bf16.mxu0 %v1534
    %1673 = vmatpush1.bf16.msra.mxu0 %v1533
    %1674 = vmatprep.mubr.bf16.mxu0 %v1202
    %1675 = vmatmul.mubr.bf16.gmra.mrb[0].mxu0 %v1201
    %v1676 = vpop.f32.mrb[0].mxu0
    %v1677 = vadd.f32 %v1634, %v1676
    %v1678 = vpop.f32.mrb[0].mxu0
    %v1679 = vadd.f32 %v1636, %v1678
    %v1680 = vpop.f32.mrb[0].mxu0
    %v1681 = vadd.f32 %v1638, %v1680
    %v1682 = vpop.f32.mrb[0].mxu0
    %v1683 = vadd.f32 %v1640, %v1682
    %1684 = vdwg.mxu0
    %v1685 = vmax.f32 %v1677, 0.0
    %v1686 = vmax.f32 %v1679, 0.0
    %v1687 = vmax.f32 %v1681, 0.0
    %v1688 = vmax.f32 %v1683, 0.0
    %v1689 = vpack.c.bf16 %v1687, %v1685
    %v1690 = vpack.c.bf16 %v1688, %v1686
    %v1691 = vld [vmem:[#allocation6] sm:$0xf]
    %v1692 = vld [vmem:[#allocation6 + $0x4] sm:$0xf]
    %v1693 = vld [vmem:[#allocation6 + $0x8] sm:$0xf]
    %v1694 = vld [vmem:[#allocation6 + $0xc] sm:$0xf]
    %v1695 = vld [vmem:[#allocation6 + $0x10] sm:$0xf]
    %v1696 = vld [vmem:[#allocation6 + $0x14] sm:$0xf]
    %v1697 = vld [vmem:[#allocation6 + $0x18] sm:$0xf]
    %v1698 = vld [vmem:[#allocation6 + $0x1c] sm:$0xf]
    %v1699 = vld [vmem:[#allocation6 + $0x20] sm:$0xf]
    %v1700 = vld [vmem:[#allocation6 + $0x24] sm:$0xf]
    %v1701 = vld [vmem:[#allocation6 + $0x28] sm:$0xf]
    %v1702 = vld [vmem:[#allocation6 + $0x2c] sm:$0xf]
    %v1703 = vld [vmem:[#allocation6 + $0x30] sm:$0xf]
    %v1704 = vld [vmem:[#allocation6 + $0x34] sm:$0xf]
    %v1705 = vld [vmem:[#allocation6 + $0x38] sm:$0xf]
    %v1706 = vld [vmem:[#allocation6 + $0x3c] sm:$0xf]
    %v1707 = vld [vmem:[#allocation6 + $0x40] sm:$0xf]
    %v1708 = vld [vmem:[#allocation6 + $0x44] sm:$0xf]
    %v1709 = vld [vmem:[#allocation6 + $0x48] sm:$0xf]
    %v1710 = vld [vmem:[#allocation6 + $0x4c] sm:$0xf]
    %v1711 = vld [vmem:[#allocation6 + $0x50] sm:$0xf]
    %v1712 = vld [vmem:[#allocation6 + $0x54] sm:$0xf]
    %v1713 = vld [vmem:[#allocation6 + $0x58] sm:$0xf]
    %v1714 = vld [vmem:[#allocation6 + $0x5c] sm:$0xf]
    %v1715 = vld [vmem:[#allocation6 + $0x60] sm:$0xf]
    %v1716 = vld [vmem:[#allocation6 + $0x64] sm:$0xf]
    %v1717 = vld [vmem:[#allocation6 + $0x68] sm:$0xf]
    %v1718 = vld [vmem:[#allocation6 + $0x6c] sm:$0xf]
    %v1719 = vld [vmem:[#allocation6 + $0x70] sm:$0xf]
    %v1720 = vld [vmem:[#allocation6 + $0x74] sm:$0xf]
    %v1721 = vld [vmem:[#allocation6 + $0x78] sm:$0xf]
    %v1722 = vld [vmem:[#allocation6 + $0x7c] sm:$0xf]
    %v1723 = vld [vmem:[%s8] sm:$0x1]
    %v1725 = vlaneseq
    %v1726 = vshrl.u32 %v1725, 7
    %v1727 = vsub.s32 0, %v1726
    %v1728 = vrot.slane %v1723, %v1727
    %v1762 = vunpack.c.l.b16 %v1691
    %v1763 = vunpack.c.l.b16 %v1692
    %v1764 = vunpack.c.l.b16 %v1693
    %v1765 = vunpack.c.l.b16 %v1694
    %v1766 = vunpack.c.l.b16 %v1695
    %v1767 = vunpack.c.l.b16 %v1696
    %v1768 = vunpack.c.l.b16 %v1697
    %v1769 = vunpack.c.l.b16 %v1698
    %v1770 = vunpack.c.l.b16 %v1699
    %v1771 = vunpack.c.l.b16 %v1700
    %v1772 = vunpack.c.l.b16 %v1701
    %v1773 = vunpack.c.l.b16 %v1702
    %v1774 = vunpack.c.l.b16 %v1703
    %v1775 = vunpack.c.l.b16 %v1704
    %v1776 = vunpack.c.l.b16 %v1705
    %v1777 = vunpack.c.l.b16 %v1706
    %v1778 = vunpack.c.l.b16 %v1707
    %v1779 = vunpack.c.l.b16 %v1708
    %v1780 = vunpack.c.l.b16 %v1709
    %v1781 = vunpack.c.l.b16 %v1710
    %v1782 = vunpack.c.l.b16 %v1711
    %v1783 = vunpack.c.l.b16 %v1712
    %v1784 = vunpack.c.l.b16 %v1713
    %v1785 = vunpack.c.l.b16 %v1714
    %v1786 = vunpack.c.l.b16 %v1715
    %v1787 = vunpack.c.l.b16 %v1716
    %v1788 = vunpack.c.l.b16 %v1717
    %v1789 = vunpack.c.l.b16 %v1718
    %v1790 = vunpack.c.l.b16 %v1719
    %v1791 = vunpack.c.l.b16 %v1720
    %v1792 = vunpack.c.l.b16 %v1721
    %v1793 = vunpack.c.l.b16 %v1722
    %v1794 = vpack.c.b16 %v1763, %v1762
    %v1795 = vpack.c.b16 %v1765, %v1764
    %v1796 = vpack.c.b16 %v1767, %v1766
    %v1797 = vpack.c.b16 %v1769, %v1768
    %v1798 = vpack.c.b16 %v1771, %v1770
    %v1799 = vpack.c.b16 %v1773, %v1772
    %v1800 = vpack.c.b16 %v1775, %v1774
    %v1801 = vpack.c.b16 %v1777, %v1776
    %v1802 = vpack.c.b16 %v1779, %v1778
    %v1803 = vpack.c.b16 %v1781, %v1780
    %v1804 = vpack.c.b16 %v1783, %v1782
    %v1805 = vpack.c.b16 %v1785, %v1784
    %v1806 = vpack.c.b16 %v1787, %v1786
    %v1807 = vpack.c.b16 %v1789, %v1788
    %v1808 = vpack.c.b16 %v1791, %v1790
    %v1809 = vpack.c.b16 %v1793, %v1792
    %1826 = vmatprep.subr.bf16.mxu0 0
    %1827 = vmatpush1.bf16.msra.mxu0 %v1794
    %1828 = vmatprep.subr.bf16.mxu0 0
    %1829 = vmatpush1.bf16.msra.mxu0 %v1795
    %1830 = vmatprep.subr.bf16.mxu0 0
    %1831 = vmatpush1.bf16.msra.mxu0 %v1796
    %1832 = vmatprep.subr.bf16.mxu0 0
    %1833 = vmatpush1.bf16.msra.mxu0 %v1797
    %1834 = vmatprep.subr.bf16.mxu0 0
    %1835 = vmatpush1.bf16.msra.mxu0 %v1798
    %1836 = vmatprep.subr.bf16.mxu0 0
    %1837 = vmatpush1.bf16.msra.mxu0 %v1799
    %1838 = vmatprep.subr.bf16.mxu0 0
    %1839 = vmatpush1.bf16.msra.mxu0 %v1800
    %1840 = vmatprep.subr.bf16.mxu0 0
    %1841 = vmatpush1.bf16.msra.mxu0 %v1801
    %1842 = vmatprep.subr.bf16.mxu0 0
    %1843 = vmatpush1.bf16.msra.mxu0 %v1802
    %1844 = vmatprep.subr.bf16.mxu0 0
    %1845 = vmatpush1.bf16.msra.mxu0 %v1803
    %1846 = vmatprep.subr.bf16.mxu0 0
    %1847 = vmatpush1.bf16.msra.mxu0 %v1804
    %1848 = vmatprep.subr.bf16.mxu0 0
    %1849 = vmatpush1.bf16.msra.mxu0 %v1805
    %1850 = vmatprep.subr.bf16.mxu0 0
    %1851 = vmatpush1.bf16.msra.mxu0 %v1806
    %1852 = vmatprep.subr.bf16.mxu0 0
    %1853 = vmatpush1.bf16.msra.mxu0 %v1807
    %1854 = vmatprep.subr.bf16.mxu0 0
    %1855 = vmatpush1.bf16.msra.mxu0 %v1808
    %1856 = vmatprep.subr.bf16.mxu0 0
    %1857 = vmatpush1.bf16.msra.mxu0 %v1809
    %1858 = vmatprep.mubr.bf16.mxu0 %v1690
    %1859 = vmatmul.mubr.bf16.gmra.mrb[0].mxu0 %v1689
    %v1860 = vpop.f32.mrb[0].mxu0
    %v1861 = vadd.f32 %v1728, %v1860
    %v1862 = vpop.f32.mrb[0].mxu0
    %v1863 = vpop.f32.mrb[0].mxu0
    %v1864 = vadd.f32 %v1728, %v1863
    %v1865 = vpop.f32.mrb[0].mxu0
    %1866 = vdwg.mxu0
    %v1867 = vlaneseq
    %v1868 = vand.u32 %v1867, 127
    %vm1869 = vcmp.lt.s32.totalorder %v1868, 4
    %v1870 = vsel %vm1869, %v1861, -1e+30
    %v1871 = vsel %vm1869, %v1864, -1e+30
    %1872 = vmax.xlane.f32.xlu0 %v1870
    %v1873 = vpop.xlane.xlu0 %1872
    %1874 = vmax.xlane.f32.xlu0 %v1871
    %v1875 = vpop.xlane.xlu0 %1874
    %v1876 = vsub.f32 %v1870, %v1873
    %v1877 = vsub.f32 %v1871, %v1875
    %v1878 = vmul.f32 %v1876, 1.442695
    %v1879 = vpow.pop %v1878
    %v1880 = vmul.f32 %v1877, 1.442695
    %v1881 = vpow.pop %v1880
    %1882 = vadd.xlane.f32.xlu0 %v1879
    %v1883 = vpop.xlane.xlu0 %1882
    %1884 = vadd.xlane.f32.xlu0 %v1881
    %v1885 = vpop.xlane.xlu0 %1884
    %v1886 = vrcp.pop %v1883
    %v1887 = vrcp.pop %v1885
    %v1888 = vmul.f32 %v1879, %v1886
    %v1889 = vmul.f32 %v1881, %v1887
    %1890 = vst [vmem:[%s9] sm:$0xff] %v1888
    %1891 = vst [vmem:[%s9 + $0x8] sm:$0xff] %v1889
    // Predicated region
    $region50: #{qnetwork_forward.1} parent=1 // pred_check
      _
    $region51: #{qnetwork_forward.1} parent=1 // pred_check_branch
      %1893 = sbr.rel (0) target = $region53
    $region52: #{qnetwork_forward.1} parent=1 // pred_region
      _
    $region53: #{qnetwork_forward.1} parent=1 // pred_fallthru
      _
    // Predicated region
    $region54: #{qnetwork_forward.1} parent=1 // pred_check
      _
    $region55: #{qnetwork_forward.1} parent=1 // pred_check_branch
      %1895 = sbr.rel (0) target = $region57
    $region56: #{qnetwork_forward.1} parent=1 // pred_region
      _
    $region57: #{qnetwork_forward.1} parent=1 // pred_fallthru
      _
    %1896 = vsyncpa [#allocation3], 1
    %1897 = vsyncpa [#allocation5], 1

</llo_original>
